<compile_context>
chip_gen: v7x
topology: tpu7x:2x2x1
jax: 0.10.0
libtpu: 0.0.40
codegen_flags: <defaults>
</compile_context>

<pallas_src>
import jax
import jax.numpy as jnp
from jax.experimental import pallas as pl
from jax.experimental.pallas import tpu as pltpu

D_MODEL = 32
NHEAD = 4
HEAD_DIM = D_MODEL // NHEAD
ATTN_EPS = 1e-6   # LinearAttention eps
LN_EPS = 1e-5     # nn.LayerNorm default eps


def _elu_feature_map(x):
    # elu(x) + 1 (alpha=1)  ==  x+1 for x>0, exp(x) for x<=0.
    # Clamp the exp argument so the unselected branch never produces inf.
    return jnp.where(x > 0, x + 1.0, jnp.exp(jnp.minimum(x, 0.0)))


def _layer_norm(x, gamma, beta):
    # x: [R, C], gamma/beta: [1, C]
    mean = jnp.mean(x, axis=-1, keepdims=True)
    var = jnp.mean(jnp.square(x - mean), axis=-1, keepdims=True)
    return (x - mean) * jax.lax.rsqrt(var + LN_EPS) * gamma + beta


def loftr_encoder_layer_kernel(x_ref, src_ref, hmask_ref,
                               wqx_t_ref, wkv_t_ref, wm_t_ref,
                               w1m_t_ref, w2_t_ref, ln_ref,
                               out_ref):
    """One grid step processes an (nb, lb, C) tile of x against (nb, S, C) of source."""
    nb, lb, C = x_ref.shape
    S = src_ref.shape[1]
    mm = wqx_t_ref.dtype          # MXU operand dtype (bf16 by default, f32 for checks)

    xf = x_ref[...].astype(jnp.float32).reshape(nb * lb, C)    # [nb*lb, C]
    sf = src_ref[...].astype(jnp.float32).reshape(nb * S, C)   # [nb*S,  C]

    # ---- fused projections: [q | hidden_x] from x, [k | v] from source ----
    qx = jnp.dot(xf.astype(mm), wqx_t_ref[...],
                 preferred_element_type=jnp.float32)            # [nb*lb, 3C]
    kv = jnp.dot(sf.astype(mm), wkv_t_ref[...],
                 preferred_element_type=jnp.float32)            # [nb*S,  2C]

    qf = _elu_feature_map(qx[:, :C]).reshape(nb, lb, C)         # feature-mapped Q
    hx = qx[:, C:]                                              # x-half of MLP hidden (pre-ReLU)
    kf = _elu_feature_map(kv[:, :C]).reshape(nb, S, C)          # feature-mapped K
    vs = kv[:, C:].reshape(nb, S, C)                            # V (no /S: cancels with *S)

    hmask = hmask_ref[...]                                      # [C, C] block-diag head mask

    # ---- LinearAttention as full-width matmuls (per-head blocks via hmask) ----
    kvmat = jax.lax.dot_general(kf.astype(mm), vs.astype(mm),
                                (((1,), (1,)), ((0,), (0,))),
                                preferred_element_type=jnp.float32)   # [nb, C, C]
    kvmat = kvmat * hmask.astype(jnp.float32)

    num = jax.lax.dot_general(qf.astype(mm), kvmat.astype(mm),
                              (((2,), (1,)), ((0,), (0,))),
                              preferred_element_type=jnp.float32)     # [nb, lb, C]

    ksum = jnp.sum(kf, axis=1)                                        # [nb, C]
    den = jax.lax.dot_general((qf * ksum[:, None, :]).astype(mm), hmask,
                              (((2,), (0,)), ((), ())),
                              preferred_element_type=jnp.float32)     # [nb, lb, C]
    z = pl.reciprocal(den + ATTN_EPS, approx=True)                    # EUP slot
    msg = (num * z).reshape(nb * lb, C)                               # [nb*lb, C]

    # ---- merge + norm1 ----
    msg = jnp.dot(msg.astype(mm), wm_t_ref[...], preferred_element_type=jnp.float32)
    msg = _layer_norm(msg, ln_ref[0:1, :], ln_ref[1:2, :])

    # ---- MLP (concat folded into split/fused weights) + norm2 ----
    hidden = hx + jnp.dot(msg.astype(mm), w1m_t_ref[...],
                          preferred_element_type=jnp.float32)
    hidden = jnp.maximum(hidden, 0.0)                                 # ReLU
    msg = jnp.dot(hidden.astype(mm), w2_t_ref[...], preferred_element_type=jnp.float32)
    msg = _layer_norm(msg, ln_ref[2:3, :], ln_ref[3:4, :])

    # ---- residual, whole-tile store ----
    # TODO(synk): if writeback dominates at production sizes, emit a lane-dense
    # (nb, lb*C) slab / bf16 output instead of last-dim-32 stores (measure first).
    out_ref[...] = (xf + msg).reshape(nb, lb, C).astype(out_ref.dtype)


def _device_kind():
    try:
        return jax.devices()[0].device_kind.lower()
    except Exception:
        return ""


def _num_tensorcores():
    """TensorCores reachable by 'parallel' grid sharding on this chip."""
    kind = _device_kind()
    if any(t in kind for t in ("v4", "v5p", "v7", "7x")):
        return 2
    return 1      # v5e / v6e: single TC — grid is a serial loop


def _vmem_budget_bytes():
    """Per-core VMEM budget used both for tile sizing and vmem_limit_bytes."""
    kind = _device_kind()
    if "v7" in kind or "7x" in kind:
        return 48 << 20       # 64 MiB physical per TC on v7x
    return 96 << 20           # 128 MiB physical on v4/v5e/v5p/v6e


def _choose_tiles(N, L, S, C, num_tc, vmem_budget, in_itemsize, out_itemsize):
    """Pick (nb, lb): largest tiles that fit VMEM, with >= num_tc parallel steps."""
    lb_opts = [d for d in range(1, L + 1) if L % d == 0 and (d % 8 == 0 or d == L)]
    nb_opts = [d for d in range(1, N + 1) if N % d == 0]
    best_key, best = None, None
    for nb in nb_opts:
        for lb in lb_opts:
            steps = (N // nb) * (L // lb)
            io_bytes = nb * (lb + S) * C * in_itemsize + nb * lb * C * out_itemsize
            tmp_bytes = 12 * nb * lb * C * 4 + 4 * nb * S * C * 4
            need = 2 * io_bytes + tmp_bytes + (2 << 20)   # 2x = input/output double buffers
            if need > vmem_budget:
                continue
            # prefer: enough steps for all TCs > fewest steps (largest tiles) > larger lb
            key = (steps >= num_tc, -steps, lb, nb)
            if best_key is None or key > best_key:
                best_key, best = key, (nb, lb)
    if best is None:
        return 1, (8 if L % 8 == 0 else L)
    return best


def loftr_encoder_layer(x, source, params, *, nb=None, lb=None,
                        compute_dtype=jnp.bfloat16):
    """x: [N, L, C], source: [N, S, C]; params in PyTorch nn.Linear convention.

    compute_dtype: dtype of MXU operands (accumulation is always f32;
    ELU / LayerNorm / Z stay f32). Default bf16 (MXU-native on v5e/v6e/v7x).
    """
    N, L, C = x.shape
    S = source.shape[1]
    assert C == D_MODEL
    wq, wk, wv, wm, g1, b1, w1, w2, g2, b2 = params
    cdt = compute_dtype

    # Host-side weight prep: pre-transpose, fuse Wq|W1x and Wk|Wv, split W1.
    wqx_t = jnp.concatenate([wq.T, w1[:, :C].T], axis=1).astype(cdt)   # [C, 3C]
    wkv_t = jnp.concatenate([wk.T, wv.T], axis=1).astype(cdt)          # [C, 2C]
    wm_t = wm.T.astype(cdt)                                            # [C, C]
    w1m_t = w1[:, C:].T.astype(cdt)                                    # [C, 2C]
    w2_t = w2.T.astype(cdt)                                            # [2C, C]
    ln = jnp.stack([g1, b1, g2, b2], axis=0).astype(jnp.float32)       # [4, C]

    # Block-diagonal same-head mask, built once host-side (hoisted out of kernel).
    rid = jax.lax.broadcasted_iota(jnp.int32, (C, C), 0) // HEAD_DIM
    cid = jax.lax.broadcasted_iota(jnp.int32, (C, C), 1) // HEAD_DIM
    hmask = (rid == cid).astype(cdt)                                   # [C, C]

    num_tc = _num_tensorcores()
    vmem_budget = _vmem_budget_bytes()
    if nb is None or lb is None:
        nb_auto, lb_auto = _choose_tiles(N, L, S, C, num_tc, vmem_budget,
                                         x.dtype.itemsize, x.dtype.itemsize)
        nb = nb_auto if nb is None else nb
        lb = lb_auto if lb is None else lb
    assert N % nb == 0 and L % lb == 0
    grid = (N // nb, L // lb)

    def wspec(shape):
        return pl.BlockSpec(shape, lambda n, l: (0, 0))

    # TODO(synk): at production LoFTR sizes (L=S~4800) also make S an
    # "arbitrary" reduction grid axis with KV/Ksum f32 accumulators in VMEM
    # scratch initialized under pl.when(program_id==0); not needed here.
    return pl.pallas_call(
        loftr_encoder_layer_kernel,
        out_shape=jax.ShapeDtypeStruct((N, L, C), x.dtype),
        grid=grid,
        in_specs=[
            pl.BlockSpec((nb, lb, C), lambda n, l: (n, l, 0)),   # x tile
            pl.BlockSpec((nb, S, C), lambda n, l: (n, 0, 0)),    # source (reused across l)
            wspec((C, C)),          # block-diagonal head mask
            wspec((C, 3 * C)),      # [Wq^T | W1x^T]
            wspec((C, 2 * C)),      # [Wk^T | Wv^T]
            wspec((C, C)),          # Wmerge^T
            wspec((C, 2 * C)),      # W1m^T (acts on message)
            wspec((2 * C, C)),      # W2^T
            wspec((4, C)),          # [gamma1; beta1; gamma2; beta2]
        ],
        out_specs=pl.BlockSpec((nb, lb, C), lambda n, l: (n, l, 0)),
        compiler_params=pltpu.CompilerParams(
            dimension_semantics=("parallel", "parallel"),
            vmem_limit_bytes=vmem_budget,
        ),
    )(x, source, hmask, wqx_t, wkv_t, wm_t, w1m_t, w2_t, ln)


def reference_forward(x, source, params):
    """Pure-JAX f32 reference mirroring the PyTorch forward (masks/embeddings = None)."""
    wq, wk, wv, wm, g1, b1, w1, w2, g2, b2 = params
    N, L, C = x.shape
    S = source.shape[1]
    H, D = NHEAD, HEAD_DIM

    q = (x @ wq.T).reshape(N, L, H, D)
    k = (source @ wk.T).reshape(N, S, H, D)
    v = (source @ wv.T).reshape(N, S, H, D)

    Q = jnp.where(q > 0, q + 1.0, jnp.exp(jnp.minimum(q, 0.0)))
    K = jnp.where(k > 0, k + 1.0, jnp.exp(jnp.minimum(k, 0.0)))
    vals = v / S
    KV = jnp.einsum("nshd,nshv->nhdv", K, vals)
    Z = 1.0 / (jnp.einsum("nlhd,nhd->nlh", Q, K.sum(axis=1)) + ATTN_EPS)
    msg = jnp.einsum("nlhd,nhdv,nlh->nlhv", Q, KV, Z) * S

    def ln(t, g, b):
        m = t.mean(-1, keepdims=True)
        var = ((t - m) ** 2).mean(-1, keepdims=True)
        return (t - m) / jnp.sqrt(var + LN_EPS) * g + b

    msg = msg.reshape(N, L, C) @ wm.T
    msg = ln(msg, g1, b1)
    cat = jnp.concatenate([x, msg], axis=-1)
    msg = jnp.maximum(cat @ w1.T, 0.0) @ w2.T
    msg = ln(msg, g2, b2)
    return x + msg


if __name__ == "__main__":
    key = jax.random.PRNGKey(0)
    keys = jax.random.split(key, 10)

    N, L, S, C = 2, 16, 16, D_MODEL

    x = jax.random.normal(keys[0], (N, L, C), dtype=jnp.float32)
    source = jax.random.normal(keys[1], (N, S, C), dtype=jnp.float32)

    scale = 0.1
    params = (
        scale * jax.random.normal(keys[2], (C, C), dtype=jnp.float32),          # Wq
        scale * jax.random.normal(keys[3], (C, C), dtype=jnp.float32),          # Wk
        scale * jax.random.normal(keys[4], (C, C), dtype=jnp.float32),          # Wv
        scale * jax.random.normal(keys[5], (C, C), dtype=jnp.float32),          # Wmerge
        jnp.ones((C,), dtype=jnp.float32),                                      # norm1 gamma
        jnp.zeros((C,), dtype=jnp.float32),                                     # norm1 beta
        scale * jax.random.normal(keys[6], (2 * C, 2 * C), dtype=jnp.float32),  # mlp W1
        scale * jax.random.normal(keys[7], (C, 2 * C), dtype=jnp.float32),      # mlp W2
        jnp.ones((C,), dtype=jnp.float32),                                      # norm2 gamma
        jnp.zeros((C,), dtype=jnp.float32),                                     # norm2 beta
    )

    ref = reference_forward(x, source, params)

    # Exact-precision path: tight correctness gate (covers approx reciprocal only).
    out_f32 = jax.block_until_ready(
        loftr_encoder_layer(x, source, params, compute_dtype=jnp.float32))
    assert out_f32.shape == (N, L, C), out_f32.shape
    assert jnp.allclose(out_f32, ref, atol=5e-3, rtol=5e-3), \
        float(jnp.max(jnp.abs(out_f32 - ref)))

    # Default optimized path: bf16 MXU operands, f32 accumulation (sanity check;
    # loose tolerance covers bf16 rounding amplified by the two LayerNorms).
    out_bf16 = jax.block_until_ready(loftr_encoder_layer(x, source, params))
    assert out_bf16.shape == (N, L, C), out_bf16.shape
    assert jnp.allclose(out_bf16, ref, atol=2e-1, rtol=1e-1), \
        float(jnp.max(jnp.abs(out_bf16 - ref)))

    print("KERNEL_OK")
</pallas_src>

<mosaic_0001>
module attributes {stable_mosaic.version = 11 : i64} {
  func.func @loftr_encoder_layer_kernel(%arg0: i32, %arg1: i32, %arg2: memref<2x16x32xf32, #tpu.memory_space<vmem>>, %arg3: memref<2x16x32xf32, #tpu.memory_space<vmem>>, %arg4: memref<32x32xf32, #tpu.memory_space<vmem>>, %arg5: memref<32x96xf32, #tpu.memory_space<vmem>>, %arg6: memref<32x64xf32, #tpu.memory_space<vmem>>, %arg7: memref<32x32xf32, #tpu.memory_space<vmem>>, %arg8: memref<32x64xf32, #tpu.memory_space<vmem>>, %arg9: memref<64x32xf32, #tpu.memory_space<vmem>>, %arg10: memref<4x32xf32, #tpu.memory_space<vmem>>, %arg11: memref<2x16x32xf32, #tpu.memory_space<vmem>>) attributes {dimension_semantics = [#tpu.dimension_semantics<parallel>, #tpu.dimension_semantics<parallel>], iteration_bounds = array<i64: 1, 1>, scalar_prefetch = 0 : i64, scratch_operands = 0 : i64, tpu.core_type = #tpu.core_type<tc>, window_params = [{transform_indices = @transform_0, window_bounds = array<i64: 2, 16, 32>}, {transform_indices = @transform_1, window_bounds = array<i64: 2, 16, 32>}, {pipeline_mode = #tpu.pipeline_mode<synchronous>, transform_indices = @transform_2, window_bounds = array<i64: 32, 32>}, {pipeline_mode = #tpu.pipeline_mode<synchronous>, transform_indices = @transform_3, window_bounds = array<i64: 32, 96>}, {pipeline_mode = #tpu.pipeline_mode<synchronous>, transform_indices = @transform_4, window_bounds = array<i64: 32, 64>}, {pipeline_mode = #tpu.pipeline_mode<synchronous>, transform_indices = @transform_5, window_bounds = array<i64: 32, 32>}, {pipeline_mode = #tpu.pipeline_mode<synchronous>, transform_indices = @transform_6, window_bounds = array<i64: 32, 64>}, {pipeline_mode = #tpu.pipeline_mode<synchronous>, transform_indices = @transform_7, window_bounds = array<i64: 64, 32>}, {pipeline_mode = #tpu.pipeline_mode<synchronous>, transform_indices = @transform_8, window_bounds = array<i64: 4, 32>}, {transform_indices = @transform_9, window_bounds = array<i64: 2, 16, 32>}]} {
    %c0 = arith.constant 0 : index
    %c0_0 = arith.constant 0 : index
    %c0_1 = arith.constant 0 : index
    %0 = vector.load %arg2[%c0, %c0_0, %c0_1] : memref<2x16x32xf32, #tpu.memory_space<vmem>>, vector<2x16x32xf32>
    %1 = vector.shape_cast %0 : vector<2x16x32xf32> to vector<32x32xf32>
    %c0_2 = arith.constant 0 : index
    %c0_3 = arith.constant 0 : index
    %c0_4 = arith.constant 0 : index
    %2 = vector.load %arg3[%c0_2, %c0_3, %c0_4] : memref<2x16x32xf32, #tpu.memory_space<vmem>>, vector<2x16x32xf32>
    %3 = vector.shape_cast %2 : vector<2x16x32xf32> to vector<32x32xf32>
    %c0_5 = arith.constant 0 : index
    %c0_6 = arith.constant 0 : index
    %4 = vector.load %arg5[%c0_5, %c0_6] : memref<32x96xf32, #tpu.memory_space<vmem>>, vector<32x96xf32>
    %cst = arith.constant dense<0.000000e+00> : vector<32x96xf32>
    %5 = tpu.matmul %1, %4, %cst {dimension_numbers = #tpu.dot_dimension_numbers<[1], [0], [0], [1], [0, 0, 1, 1], [], []>} : vector<32x32xf32>, vector<32x96xf32>, vector<32x96xf32> -> vector<32x96xf32>
    %c0_7 = arith.constant 0 : index
    %c0_8 = arith.constant 0 : index
    %6 = vector.load %arg6[%c0_7, %c0_8] : memref<32x64xf32, #tpu.memory_space<vmem>>, vector<32x64xf32>
    %cst_9 = arith.constant dense<0.000000e+00> : vector<32x64xf32>
    %7 = tpu.matmul %3, %6, %cst_9 {dimension_numbers = #tpu.dot_dimension_numbers<[1], [0], [0], [1], [0, 0, 1, 1], [], []>} : vector<32x32xf32>, vector<32x64xf32>, vector<32x64xf32> -> vector<32x64xf32>
    %8 = vector.extract_strided_slice %5 {offsets = [0, 0], sizes = [32, 32], strides = [1, 1]} : vector<32x96xf32> to vector<32x32xf32>
    %cst_10 = arith.constant 0.000000e+00 : f32
    %9 = vector.broadcast %cst_10 : f32 to vector<32x32xf32>
    %10 = arith.cmpf ogt, %8, %9 : vector<32x32xf32>
    %cst_11 = arith.constant 1.000000e+00 : f32
    %11 = vector.broadcast %cst_11 : f32 to vector<32x32xf32>
    %12 = arith.addf %8, %11 : vector<32x32xf32>
    %cst_12 = arith.constant 0.000000e+00 : f32
    %13 = vector.broadcast %cst_12 : f32 to vector<32x32xf32>
    %14 = arith.minimumf %8, %13 : vector<32x32xf32>
    %15 = math.exp %14 : vector<32x32xf32>
    %16 = arith.select %10, %12, %15 : vector<32x32xi1>, vector<32x32xf32>
    %17 = vector.shape_cast %16 : vector<32x32xf32> to vector<2x16x32xf32>
    %18 = vector.extract_strided_slice %5 {offsets = [0, 32], sizes = [32, 64], strides = [1, 1]} : vector<32x96xf32> to vector<32x64xf32>
    %19 = vector.extract_strided_slice %7 {offsets = [0, 0], sizes = [32, 32], strides = [1, 1]} : vector<32x64xf32> to vector<32x32xf32>
    %cst_13 = arith.constant 0.000000e+00 : f32
    %20 = vector.broadcast %cst_13 : f32 to vector<32x32xf32>
    %21 = arith.cmpf ogt, %19, %20 : vector<32x32xf32>
    %cst_14 = arith.constant 1.000000e+00 : f32
    %22 = vector.broadcast %cst_14 : f32 to vector<32x32xf32>
    %23 = arith.addf %19, %22 : vector<32x32xf32>
    %cst_15 = arith.constant 0.000000e+00 : f32
    %24 = vector.broadcast %cst_15 : f32 to vector<32x32xf32>
    %25 = arith.minimumf %19, %24 : vector<32x32xf32>
    %26 = math.exp %25 : vector<32x32xf32>
    %27 = arith.select %21, %23, %26 : vector<32x32xi1>, vector<32x32xf32>
    %28 = vector.shape_cast %27 : vector<32x32xf32> to vector<2x16x32xf32>
    %29 = vector.extract_strided_slice %7 {offsets = [0, 32], sizes = [32, 32], strides = [1, 1]} : vector<32x64xf32> to vector<32x32xf32>
    %30 = vector.shape_cast %29 : vector<32x32xf32> to vector<2x16x32xf32>
    %c0_16 = arith.constant 0 : index
    %c0_17 = arith.constant 0 : index
    %31 = vector.load %arg4[%c0_16, %c0_17] : memref<32x32xf32, #tpu.memory_space<vmem>>, vector<32x32xf32>
    %cst_18 = arith.constant dense<0.000000e+00> : vector<2x32x32xf32>
    %32 = tpu.matmul %28, %30, %cst_18 {dimension_numbers = #tpu.dot_dimension_numbers<[1], [1], [2], [2], [0, 0, 0, 2, 1, 2], [0], [0]>} : vector<2x16x32xf32>, vector<2x16x32xf32>, vector<2x32x32xf32> -> vector<2x32x32xf32>
    %33 = vector.shape_cast %31 : vector<32x32xf32> to vector<1x32x32xf32>
    %34 = vector.broadcast %33 : vector<1x32x32xf32> to vector<2x32x32xf32>
    %35 = arith.mulf %32, %34 : vector<2x32x32xf32>
    %cst_19 = arith.constant dense<0.000000e+00> : vector<2x16x32xf32>
    %36 = tpu.matmul %17, %35, %cst_19 {dimension_numbers = #tpu.dot_dimension_numbers<[2], [1], [1], [2], [0, 0, 0, 1, 1, 2], [0], [0]>} : vector<2x16x32xf32>, vector<2x32x32xf32>, vector<2x16x32xf32> -> vector<2x16x32xf32>
    %cst_20 = arith.constant dense<0.000000e+00> : vector<2x32xf32>
    %37 = vector.multi_reduction <add>, %28, %cst_20 [1] : vector<2x16x32xf32> to vector<2x32xf32>
    %38 = vector.shape_cast %37 : vector<2x32xf32> to vector<2x1x32xf32>
    %39 = vector.broadcast %38 : vector<2x1x32xf32> to vector<2x16x32xf32>
    %40 = arith.mulf %17, %39 : vector<2x16x32xf32>
    %cst_21 = arith.constant dense<0.000000e+00> : vector<2x16x32xf32>
    %41 = tpu.matmul %40, %31, %cst_21 {dimension_numbers = #tpu.dot_dimension_numbers<[2], [0], [0, 1], [1], [0, 0, 0, 1, 1, 1], [], []>} : vector<2x16x32xf32>, vector<32x32xf32>, vector<2x16x32xf32> -> vector<2x16x32xf32>
    %cst_22 = arith.constant 9.99999997E-7 : f32
    %42 = vector.broadcast %cst_22 : f32 to vector<2x16x32xf32>
    %43 = arith.addf %41, %42 : vector<2x16x32xf32>
    %44 = tpu.reciprocal %43 {approx = true} : vector<2x16x32xf32> -> vector<2x16x32xf32>
    %45 = arith.mulf %36, %44 : vector<2x16x32xf32>
    %46 = vector.shape_cast %45 : vector<2x16x32xf32> to vector<32x32xf32>
    %c0_23 = arith.constant 0 : index
    %c0_24 = arith.constant 0 : index
    %47 = vector.load %arg7[%c0_23, %c0_24] : memref<32x32xf32, #tpu.memory_space<vmem>>, vector<32x32xf32>
    %cst_25 = arith.constant dense<0.000000e+00> : vector<32x32xf32>
    %48 = tpu.matmul %46, %47, %cst_25 {dimension_numbers = #tpu.dot_dimension_numbers<[1], [0], [0], [1], [0, 0, 1, 1], [], []>} : vector<32x32xf32>, vector<32x32xf32>, vector<32x32xf32> -> vector<32x32xf32>
    %c0_26 = arith.constant 0 : index
    %c0_27 = arith.constant 0 : index
    %49 = vector.load %arg10[%c0_26, %c0_27] : memref<4x32xf32, #tpu.memory_space<vmem>>, vector<1x32xf32>
    %c1 = arith.constant 1 : index
    %c0_28 = arith.constant 0 : index
    %50 = vector.load %arg10[%c1, %c0_28] : memref<4x32xf32, #tpu.memory_space<vmem>>, vector<1x32xf32>
    %cst_29 = arith.constant dense<0.000000e+00> : vector<32xf32>
    %51 = vector.multi_reduction <add>, %48, %cst_29 [1] : vector<32x32xf32> to vector<32xf32>
    %52 = vector.shape_cast %51 : vector<32xf32> to vector<32x1xf32>
    %cst_30 = arith.constant 3.200000e+01 : f32
    %53 = vector.broadcast %cst_30 : f32 to vector<32x1xf32>
    %54 = arith.divf %52, %53 : vector<32x1xf32>
    %55 = vector.broadcast %54 : vector<32x1xf32> to vector<32x32xf32>
    %56 = arith.subf %48, %55 : vector<32x32xf32>
    %57 = arith.mulf %56, %56 : vector<32x32xf32>
    %cst_31 = arith.constant dense<0.000000e+00> : vector<32xf32>
    %58 = vector.multi_reduction <add>, %57, %cst_31 [1] : vector<32x32xf32> to vector<32xf32>
    %59 = vector.shape_cast %58 : vector<32xf32> to vector<32x1xf32>
    %cst_32 = arith.constant 3.200000e+01 : f32
    %60 = vector.broadcast %cst_32 : f32 to vector<32x1xf32>
    %61 = arith.divf %59, %60 : vector<32x1xf32>
    %62 = vector.broadcast %54 : vector<32x1xf32> to vector<32x32xf32>
    %63 = arith.subf %48, %62 : vector<32x32xf32>
    %cst_33 = arith.constant 9.99999974E-6 : f32
    %64 = vector.broadcast %cst_33 : f32 to vector<32x1xf32>
    %65 = arith.addf %61, %64 : vector<32x1xf32>
    %66 = math.rsqrt %65 : vector<32x1xf32>
    %67 = vector.broadcast %66 : vector<32x1xf32> to vector<32x32xf32>
    %68 = arith.mulf %63, %67 : vector<32x32xf32>
    %69 = vector.broadcast %49 : vector<1x32xf32> to vector<32x32xf32>
    %70 = arith.mulf %68, %69 : vector<32x32xf32>
    %71 = vector.broadcast %50 : vector<1x32xf32> to vector<32x32xf32>
    %72 = arith.addf %70, %71 : vector<32x32xf32>
    %c0_34 = arith.constant 0 : index
    %c0_35 = arith.constant 0 : index
    %73 = vector.load %arg8[%c0_34, %c0_35] : memref<32x64xf32, #tpu.memory_space<vmem>>, vector<32x64xf32>
    %cst_36 = arith.constant dense<0.000000e+00> : vector<32x64xf32>
    %74 = tpu.matmul %72, %73, %cst_36 {dimension_numbers = #tpu.dot_dimension_numbers<[1], [0], [0], [1], [0, 0, 1, 1], [], []>} : vector<32x32xf32>, vector<32x64xf32>, vector<32x64xf32> -> vector<32x64xf32>
    %75 = arith.addf %18, %74 : vector<32x64xf32>
    %cst_37 = arith.constant 0.000000e+00 : f32
    %76 = vector.broadcast %cst_37 : f32 to vector<32x64xf32>
    %77 = arith.maximumf %75, %76 : vector<32x64xf32>
    %c0_38 = arith.constant 0 : index
    %c0_39 = arith.constant 0 : index
    %78 = vector.load %arg9[%c0_38, %c0_39] : memref<64x32xf32, #tpu.memory_space<vmem>>, vector<64x32xf32>
    %cst_40 = arith.constant dense<0.000000e+00> : vector<32x32xf32>
    %79 = tpu.matmul %77, %78, %cst_40 {dimension_numbers = #tpu.dot_dimension_numbers<[1], [0], [0], [1], [0, 0, 1, 1], [], []>} : vector<32x64xf32>, vector<64x32xf32>, vector<32x32xf32> -> vector<32x32xf32>
    %c2 = arith.constant 2 : index
    %c0_41 = arith.constant 0 : index
    %80 = vector.load %arg10[%c2, %c0_41] : memref<4x32xf32, #tpu.memory_space<vmem>>, vector<1x32xf32>
    %c3 = arith.constant 3 : index
    %c0_42 = arith.constant 0 : index
    %81 = vector.load %arg10[%c3, %c0_42] : memref<4x32xf32, #tpu.memory_space<vmem>>, vector<1x32xf32>
    %cst_43 = arith.constant dense<0.000000e+00> : vector<32xf32>
    %82 = vector.multi_reduction <add>, %79, %cst_43 [1] : vector<32x32xf32> to vector<32xf32>
    %83 = vector.shape_cast %82 : vector<32xf32> to vector<32x1xf32>
    %cst_44 = arith.constant 3.200000e+01 : f32
    %84 = vector.broadcast %cst_44 : f32 to vector<32x1xf32>
    %85 = arith.divf %83, %84 : vector<32x1xf32>
    %86 = vector.broadcast %85 : vector<32x1xf32> to vector<32x32xf32>
    %87 = arith.subf %79, %86 : vector<32x32xf32>
    %88 = arith.mulf %87, %87 : vector<32x32xf32>
    %cst_45 = arith.constant dense<0.000000e+00> : vector<32xf32>
    %89 = vector.multi_reduction <add>, %88, %cst_45 [1] : vector<32x32xf32> to vector<32xf32>
    %90 = vector.shape_cast %89 : vector<32xf32> to vector<32x1xf32>
    %cst_46 = arith.constant 3.200000e+01 : f32
    %91 = vector.broadcast %cst_46 : f32 to vector<32x1xf32>
    %92 = arith.divf %90, %91 : vector<32x1xf32>
    %93 = vector.broadcast %85 : vector<32x1xf32> to vector<32x32xf32>
    %94 = arith.subf %79, %93 : vector<32x32xf32>
    %cst_47 = arith.constant 9.99999974E-6 : f32
    %95 = vector.broadcast %cst_47 : f32 to vector<32x1xf32>
    %96 = arith.addf %92, %95 : vector<32x1xf32>
    %97 = math.rsqrt %96 : vector<32x1xf32>
    %98 = vector.broadcast %97 : vector<32x1xf32> to vector<32x32xf32>
    %99 = arith.mulf %94, %98 : vector<32x32xf32>
    %100 = vector.broadcast %80 : vector<1x32xf32> to vector<32x32xf32>
    %101 = arith.mulf %99, %100 : vector<32x32xf32>
    %102 = vector.broadcast %81 : vector<1x32xf32> to vector<32x32xf32>
    %103 = arith.addf %101, %102 : vector<32x32xf32>
    %104 = arith.addf %1, %103 : vector<32x32xf32>
    %105 = vector.shape_cast %104 : vector<32x32xf32> to vector<2x16x32xf32>
    %c0_48 = arith.constant 0 : index
    %c0_49 = arith.constant 0 : index
    %c0_50 = arith.constant 0 : index
    %106 = vector.load %arg11[%c0_48, %c0_49, %c0_50] : memref<2x16x32xf32, #tpu.memory_space<vmem>>, vector<2x16x32xf32>
    tpu.vector_store %arg11[%c0_48, %c0_49, %c0_50], %105 {strides = array<i32>} : memref<2x16x32xf32, #tpu.memory_space<vmem>>, vector<2x16x32xf32>,
    return
  }
  func.func @transform_0(%arg0: i32, %arg1: i32) -> (i32, i32, i32) {
    %c0_i32 = arith.constant 0 : i32
    %c0_i32_0 = arith.constant 0 : i32
    return %arg0, %arg1, %c0_i32 : i32, i32, i32
  }
  func.func @transform_1(%arg0: i32, %arg1: i32) -> (i32, i32, i32) {
    %c0_i32 = arith.constant 0 : i32
    %c0_i32_0 = arith.constant 0 : i32
    %c0_i32_1 = arith.constant 0 : i32
    return %arg0, %c0_i32, %c0_i32_0 : i32, i32, i32
  }
  func.func @transform_2(%arg0: i32, %arg1: i32) -> (i32, i32) {
    %c0_i32 = arith.constant 0 : i32
    %c0_i32_0 = arith.constant 0 : i32
    %c0_i32_1 = arith.constant 0 : i32
    return %c0_i32, %c0_i32_0 : i32, i32
  }
  func.func @transform_3(%arg0: i32, %arg1: i32) -> (i32, i32) {
    %c0_i32 = arith.constant 0 : i32
    %c0_i32_0 = arith.constant 0 : i32
    %c0_i32_1 = arith.constant 0 : i32
    return %c0_i32, %c0_i32_0 : i32, i32
  }
  func.func @transform_4(%arg0: i32, %arg1: i32) -> (i32, i32) {
    %c0_i32 = arith.constant 0 : i32
    %c0_i32_0 = arith.constant 0 : i32
    %c0_i32_1 = arith.constant 0 : i32
    return %c0_i32, %c0_i32_0 : i32, i32
  }
  func.func @transform_5(%arg0: i32, %arg1: i32) -> (i32, i32) {
    %c0_i32 = arith.constant 0 : i32
    %c0_i32_0 = arith.constant 0 : i32
    %c0_i32_1 = arith.constant 0 : i32
    return %c0_i32, %c0_i32_0 : i32, i32
  }
  func.func @transform_6(%arg0: i32, %arg1: i32) -> (i32, i32) {
    %c0_i32 = arith.constant 0 : i32
    %c0_i32_0 = arith.constant 0 : i32
    %c0_i32_1 = arith.constant 0 : i32
    return %c0_i32, %c0_i32_0 : i32, i32
  }
  func.func @transform_7(%arg0: i32, %arg1: i32) -> (i32, i32) {
    %c0_i32 = arith.constant 0 : i32
    %c0_i32_0 = arith.constant 0 : i32
    %c0_i32_1 = arith.constant 0 : i32
    return %c0_i32, %c0_i32_0 : i32, i32
  }
  func.func @transform_8(%arg0: i32, %arg1: i32) -> (i32, i32) {
    %c0_i32 = arith.constant 0 : i32
    %c0_i32_0 = arith.constant 0 : i32
    %c0_i32_1 = arith.constant 0 : i32
    return %c0_i32, %c0_i32_0 : i32, i32
  }
  func.func @transform_9(%arg0: i32, %arg1: i32) -> (i32, i32, i32) {
    %c0_i32 = arith.constant 0 : i32
    %c0_i32_0 = arith.constant 0 : i32
    return %arg0, %arg1, %c0_i32 : i32, i32, i32
  }
}

</mosaic_0001>

<llo_original>
// kernel: tpu_custom_call.1
$region0: #{tpu_custom_call.1}
  #allocation0 [shape = 'u32[]', space=smem, size = 0x4, offset = 0x4, fixed_abs, tag = 'smem constant byte address 0x4 - core index']
  #allocation1 [shape = 'u32[144,128]{1,0:T(1,128)}', space=vmem, size = 0x12000, scoped, tag = 'internal scratch']
  %s0 = inlined_call_operand.hbm [shape: f32[2,16,32], index: 0, kind: input, shape index: {}]
  %s1 = inlined_call_operand.hbm [shape: f32[2,16,32], index: 1, kind: input, shape index: {}]
  %s2 = inlined_call_operand.hbm [shape: f32[32,32], index: 2, kind: input, shape index: {}]
  %s3 = inlined_call_operand.hbm [shape: f32[32,96], index: 3, kind: input, shape index: {}]
  %s4 = inlined_call_operand.hbm [shape: f32[32,64], index: 4, kind: input, shape index: {}]
  %s5 = inlined_call_operand.hbm [shape: f32[32,32], index: 5, kind: input, shape index: {}]
  %s6 = inlined_call_operand.hbm [shape: f32[32,64], index: 6, kind: input, shape index: {}]
  %s7 = inlined_call_operand.hbm [shape: f32[64,32], index: 7, kind: input, shape index: {}]
  %s8 = inlined_call_operand.hbm [shape: f32[4,32], index: 8, kind: input, shape index: {}]
  %s9 = inlined_call_operand.hbm [shape: f32[2,16,32], index: 9, kind: output, shape index: {}]
  %s10 = sld [smem:[#allocation0]]
  $region82: #{tpu_custom_call.1} parent=0
    _
  %s12 = ssub.s32 1, %s10
  %s13 = scalar_select 0, %s12, %s10
  $region1: #{tpu_custom_call.1} parent=0
    #allocation2 [shape = 'u8[16384]{0}', space=vmem, size = 0x4000, scoped, tag = 'input window, operand 0, single buffered']
    #allocation3 [shape = 's32[1]{0}', space=sflag, size = 0x4, scoped, tag = 'scoped memory for tpu_custom_call.1']
    #allocation4 [shape = 's32[1]{0}', space=sflag, size = 0x4, scoped, tag = 'scoped memory for tpu_custom_call.1']
    #allocation5 [shape = 'u8[16384]{0}', space=vmem, size = 0x4000, scoped, tag = 'input window, operand 1, single buffered']
    #allocation6 [shape = 's32[1]{0}', space=sflag, size = 0x4, scoped, tag = 'scoped memory for tpu_custom_call.1']
    #allocation7 [shape = 'u8[16384]{0}', space=vmem, size = 0x4000, scoped, tag = 'input window, operand 2, single buffered']
    #allocation8 [shape = 'u8[16384]{0}', space=vmem, size = 0x4000, scoped, tag = 'input window, operand 3, single buffered']
    #allocation9 [shape = 's32[1]{0}', space=sflag, size = 0x4, scoped, tag = 'scoped memory for tpu_custom_call.1']
    #allocation10 [shape = 'u8[16384]{0}', space=vmem, size = 0x4000, scoped, tag = 'input window, operand 4, single buffered']
    #allocation11 [shape = 'u8[16384]{0}', space=vmem, size = 0x4000, scoped, tag = 'input window, operand 5, single buffered']
    #allocation12 [shape = 's32[1]{0}', space=sflag, size = 0x4, scoped, tag = 'scoped memory for tpu_custom_call.1']
    #allocation13 [shape = 'u8[16384]{0}', space=vmem, size = 0x4000, scoped, tag = 'input window, operand 6, single buffered']
    #allocation14 [shape = 'u8[32768]{0}', space=vmem, size = 0x8000, scoped, tag = 'input window, operand 7, single buffered']
    #allocation15 [shape = 's32[1]{0}', space=sflag, size = 0x4, scoped, tag = 'scoped memory for tpu_custom_call.1']
    #allocation16 [shape = 'u8[2048]{0}', space=vmem, size = 0x800, scoped, tag = 'input window, operand 8, single buffered']
    #allocation17 [shape = 'u8[16384]{0}', space=vmem, size = 0x4000, scoped, tag = 'output window, operand 0, single buffered']
    %14 = vsyncpa [#allocation3], 0
    %15 = vsyncpa [#allocation6], 0
    %16 = vsyncpa [#allocation9], 0
    %17 = vsyncpa [#allocation12], 0
    %18 = vsyncpa [#allocation15], 0
    %19 = vsyncpa [#allocation4], 0
    // Predicated region
    $region2: #{tpu_custom_call.1} parent=1 // pred_check
      _
    $region3: #{tpu_custom_call.1} parent=1 // pred_check_branch
      %21 = sbr.rel (0) target = $region5
    $region4: #{tpu_custom_call.1} parent=1 // pred_region
      %s23 = ssub.s32 512, 512
      %24 = vsyncadd [#allocation3], %s23
      %s25 = sshll.u32 [#allocation2], 4
      %s26 = int_to_ptr.vmem [resolvable:$true] %s25
      %31 = dma.hbm_to_vmem [thread:$0]  %s0, 512, %s26, [#allocation3], 128, 128, 8
    $region5: #{tpu_custom_call.1} parent=1 // pred_fallthru
      _
    // Predicated region
    $region6: #{tpu_custom_call.1} parent=1 // pred_check
      _
    $region7: #{tpu_custom_call.1} parent=1 // pred_check_branch
      %33 = sbr.rel (0) target = $region9
    $region8: #{tpu_custom_call.1} parent=1 // pred_region
      %s35 = ssub.s32 512, 512
      %36 = vsyncadd [#allocation6], %s35
      %s37 = sshll.u32 [#allocation5], 4
      %s38 = int_to_ptr.vmem [resolvable:$true] %s37
      %43 = dma.hbm_to_vmem [thread:$0]  %s1, 512, %s38, [#allocation6], 128, 128, 8
    $region9: #{tpu_custom_call.1} parent=1 // pred_fallthru
      _
    // Predicated region
    $region10: #{tpu_custom_call.1} parent=1 // pred_check
      _
    $region11: #{tpu_custom_call.1} parent=1 // pred_check_branch
      %45 = sbr.rel (0) target = $region13
    $region12: #{tpu_custom_call.1} parent=1 // pred_region
      %s47 = ssub.s32 512, 512
      %48 = vsyncadd [#allocation6], %s47
      %s49 = sshll.u32 [#allocation7], 4
      %s50 = int_to_ptr.vmem [resolvable:$true] %s49
      %55 = dma.hbm_to_vmem [thread:$0]  %s2, 512, %s50, [#allocation6], 128, 128, 8
    $region13: #{tpu_custom_call.1} parent=1 // pred_fallthru
      _
    // Predicated region
    $region14: #{tpu_custom_call.1} parent=1 // pred_check
      _
    $region15: #{tpu_custom_call.1} parent=1 // pred_check_branch
      %57 = sbr.rel (0) target = $region17
    $region16: #{tpu_custom_call.1} parent=1 // pred_region
      %s59 = ssub.s32 512, 512
      %60 = vsyncadd [#allocation9], %s59
      %s61 = sshll.u32 [#allocation8], 4
      %s62 = int_to_ptr.vmem [resolvable:$true] %s61
      %67 = dma.hbm_to_vmem [thread:$0]  %s3, 512, %s62, [#allocation9], 128, 128, 8
    $region17: #{tpu_custom_call.1} parent=1 // pred_fallthru
      _
    // Predicated region
    $region18: #{tpu_custom_call.1} parent=1 // pred_check
      _
    $region19: #{tpu_custom_call.1} parent=1 // pred_check_branch
      %69 = sbr.rel (0) target = $region21
    $region20: #{tpu_custom_call.1} parent=1 // pred_region
      %s71 = ssub.s32 512, 512
      %72 = vsyncadd [#allocation9], %s71
      %s73 = sshll.u32 [#allocation10], 4
      %s74 = int_to_ptr.vmem [resolvable:$true] %s73
      %79 = dma.hbm_to_vmem [thread:$0]  %s4, 512, %s74, [#allocation9], 128, 128, 8
    $region21: #{tpu_custom_call.1} parent=1 // pred_fallthru
      _
    // Predicated region
    $region22: #{tpu_custom_call.1} parent=1 // pred_check
      _
    $region23: #{tpu_custom_call.1} parent=1 // pred_check_branch
      %81 = sbr.rel (0) target = $region25
    $region24: #{tpu_custom_call.1} parent=1 // pred_region
      %s83 = ssub.s32 512, 512
      %84 = vsyncadd [#allocation12], %s83
      %s85 = sshll.u32 [#allocation11], 4
      %s86 = int_to_ptr.vmem [resolvable:$true] %s85
      %91 = dma.hbm_to_vmem [thread:$0]  %s5, 512, %s86, [#allocation12], 128, 128, 8
    $region25: #{tpu_custom_call.1} parent=1 // pred_fallthru
      _
    // Predicated region
    $region26: #{tpu_custom_call.1} parent=1 // pred_check
      _
    $region27: #{tpu_custom_call.1} parent=1 // pred_check_branch
      %93 = sbr.rel (0) target = $region29
    $region28: #{tpu_custom_call.1} parent=1 // pred_region
      %s95 = ssub.s32 512, 512
      %96 = vsyncadd [#allocation12], %s95
      %s97 = sshll.u32 [#allocation13], 4
      %s98 = int_to_ptr.vmem [resolvable:$true] %s97
      %103 = dma.hbm_to_vmem [thread:$0]  %s6, 512, %s98, [#allocation12], 128, 128, 8
    $region29: #{tpu_custom_call.1} parent=1 // pred_fallthru
      _
    // Predicated region
    $region30: #{tpu_custom_call.1} parent=1 // pred_check
      _
    $region31: #{tpu_custom_call.1} parent=1 // pred_check_branch
      %105 = sbr.rel (0) target = $region33
    $region32: #{tpu_custom_call.1} parent=1 // pred_region
      %s107 = ssub.s32 1024, 1024
      %108 = vsyncadd [#allocation15], %s107
      %s109 = sshll.u32 [#allocation14], 4
      %s110 = int_to_ptr.vmem [resolvable:$true] %s109
      %115 = dma.hbm_to_vmem [thread:$0]  %s7, 1024, %s110, [#allocation15], 128, 128, 8
    $region33: #{tpu_custom_call.1} parent=1 // pred_fallthru
      _
    // Predicated region
    $region34: #{tpu_custom_call.1} parent=1 // pred_check
      _
    $region35: #{tpu_custom_call.1} parent=1 // pred_check_branch
      %117 = sbr.rel (0) target = $region37
    $region36: #{tpu_custom_call.1} parent=1 // pred_region
      %s119 = ssub.s32 64, 64
      %120 = vsyncadd [#allocation15], %s119
      %s122 = sshll.u32 [#allocation16], 4
      %s123 = int_to_ptr.vmem [resolvable:$true] %s122
      %125 = dma.hbm_to_vmem [thread:$0]  %s8, 64, %s123, [#allocation15]
    $region37: #{tpu_custom_call.1} parent=1 // pred_fallthru
      _
    // Predicated region
    $region38: #{tpu_custom_call.1} parent=1 // pred_check
      _
    $region39: #{tpu_custom_call.1} parent=1 // pred_check_branch
      %127 = sbr.rel (0) target = $region41
    $region40: #{tpu_custom_call.1} parent=1 // pred_region
      %128 = dma.done [#allocation3], 512
    $region41: #{tpu_custom_call.1} parent=1 // pred_fallthru
      _
    // Predicated region
    $region42: #{tpu_custom_call.1} parent=1 // pred_check
      _
    $region43: #{tpu_custom_call.1} parent=1 // pred_check_branch
      %130 = sbr.rel (0) target = $region45
    $region44: #{tpu_custom_call.1} parent=1 // pred_region
      %131 = dma.done [#allocation6], 512
    $region45: #{tpu_custom_call.1} parent=1 // pred_fallthru
      _
    // Predicated region
    $region46: #{tpu_custom_call.1} parent=1 // pred_check
      _
    $region47: #{tpu_custom_call.1} parent=1 // pred_check_branch
      %133 = sbr.rel (0) target = $region49
    $region48: #{tpu_custom_call.1} parent=1 // pred_region
      %134 = dma.done [#allocation6], 512
    $region49: #{tpu_custom_call.1} parent=1 // pred_fallthru
      _
    // Predicated region
    $region50: #{tpu_custom_call.1} parent=1 // pred_check
      _
    $region51: #{tpu_custom_call.1} parent=1 // pred_check_branch
      %136 = sbr.rel (0) target = $region53
    $region52: #{tpu_custom_call.1} parent=1 // pred_region
      %137 = dma.done [#allocation9], 512
    $region53: #{tpu_custom_call.1} parent=1 // pred_fallthru
      _
    // Predicated region
    $region54: #{tpu_custom_call.1} parent=1 // pred_check
      _
    $region55: #{tpu_custom_call.1} parent=1 // pred_check_branch
      %139 = sbr.rel (0) target = $region57
    $region56: #{tpu_custom_call.1} parent=1 // pred_region
      %140 = dma.done [#allocation9], 512
    $region57: #{tpu_custom_call.1} parent=1 // pred_fallthru
      _
    // Predicated region
    $region58: #{tpu_custom_call.1} parent=1 // pred_check
      _
    $region59: #{tpu_custom_call.1} parent=1 // pred_check_branch
      %142 = sbr.rel (0) target = $region61
    $region60: #{tpu_custom_call.1} parent=1 // pred_region
      %143 = dma.done [#allocation12], 512
    $region61: #{tpu_custom_call.1} parent=1 // pred_fallthru
      _
    // Predicated region
    $region62: #{tpu_custom_call.1} parent=1 // pred_check
      _
    $region63: #{tpu_custom_call.1} parent=1 // pred_check_branch
      %145 = sbr.rel (0) target = $region65
    $region64: #{tpu_custom_call.1} parent=1 // pred_region
      %146 = dma.done [#allocation12], 512
    $region65: #{tpu_custom_call.1} parent=1 // pred_fallthru
      _
    // Predicated region
    $region66: #{tpu_custom_call.1} parent=1 // pred_check
      _
    $region67: #{tpu_custom_call.1} parent=1 // pred_check_branch
      %148 = sbr.rel (0) target = $region69
    $region68: #{tpu_custom_call.1} parent=1 // pred_region
      %149 = dma.done [#allocation15], 1024
    $region69: #{tpu_custom_call.1} parent=1 // pred_fallthru
      _
    // Predicated region
    $region70: #{tpu_custom_call.1} parent=1 // pred_check
      _
    $region71: #{tpu_custom_call.1} parent=1 // pred_check_branch
      %151 = sbr.rel (0) target = $region73
    $region72: #{tpu_custom_call.1} parent=1 // pred_region
      %152 = dma.done [#allocation15], 64
    $region73: #{tpu_custom_call.1} parent=1 // pred_fallthru
      _
    %v153 = vld [vmem:[#allocation2] sm:$0xff]
    %v154 = vld [vmem:[#allocation2 + $0x8] sm:$0xff]
    %v155 = vld [vmem:[#allocation2 + $0x10] sm:$0xff]
    %v156 = vld [vmem:[#allocation2 + $0x18] sm:$0xff]
    %v157 = vld [vmem:[#allocation5] sm:$0xff]
    %v158 = vld [vmem:[#allocation5 + $0x8] sm:$0xff]
    %v159 = vld [vmem:[#allocation5 + $0x10] sm:$0xff]
    %v160 = vld [vmem:[#allocation5 + $0x18] sm:$0xff]
    %v161 = vld [vmem:[#allocation8] sm:$0xff]
    %v162 = vld [vmem:[#allocation8 + $0x8] sm:$0xff]
    %v163 = vld [vmem:[#allocation8 + $0x10] sm:$0xff]
    %v164 = vld [vmem:[#allocation8 + $0x18] sm:$0xff]
    %vm165 = vcmask 261120
    %v167 = vsel %vm165, %v153, 0
    %v170 = vsel %vm165, %v154, 0
    %v173 = vsel %vm165, %v155, 0
    %v176 = vsel %vm165, %v156, 0
    %178 = vmatprep.subr.mxu0 0.0
    %179 = vmatpush1.msra.mxu0 %v161
    %180 = vmatprep.subr.mxu0 0.0
    %181 = vmatpush1.msra.mxu0 %v162
    %182 = vmatprep.subr.mxu0 0.0
    %183 = vmatpush1.msra.mxu0 %v163
    %184 = vmatprep.subr.mxu0 0.0
    %185 = vmatpush1.msra.mxu0 %v164
    %186 = vmatprep.subr.mxu0 0.0
    %187 = vmatpush1.msra.mxu0 0.0
    %188 = vmatprep.subr.mxu0 0.0
    %189 = vmatpush1.msra.mxu0 0.0
    %190 = vmatprep.subr.mxu0 0.0
    %191 = vmatpush1.msra.mxu0 0.0
    %192 = vmatprep.subr.mxu0 0.0
    %193 = vmatpush1.msra.mxu0 0.0
    %194 = vmatprep.subr.mxu0 0.0
    %195 = vmatpush1.msra.mxu0 0.0
    %196 = vmatprep.subr.mxu0 0.0
    %197 = vmatpush1.msra.mxu0 0.0
    %198 = vmatprep.subr.mxu0 0.0
    %199 = vmatpush1.msra.mxu0 0.0
    %200 = vmatprep.subr.mxu0 0.0
    %201 = vmatpush1.msra.mxu0 0.0
    %202 = vmatprep.subr.mxu0 0.0
    %203 = vmatpush1.msra.mxu0 0.0
    %204 = vmatprep.subr.mxu0 0.0
    %205 = vmatpush1.msra.mxu0 0.0
    %206 = vmatprep.subr.mxu0 0.0
    %207 = vmatpush1.msra.mxu0 0.0
    %208 = vmatprep.subr.mxu0 0.0
    %209 = vmatpush1.msra.mxu0 0.0
    %210 = vmatprep.subr.mxu0 0.0
    %211 = vmatpush1.msra.mxu0 0.0
    %212 = vmatprep.subr.mxu0 0.0
    %213 = vmatpush1.msra.mxu0 0.0
    %214 = vmatprep.subr.mxu0 0.0
    %215 = vmatpush1.msra.mxu0 0.0
    %216 = vmatprep.subr.mxu0 0.0
    %217 = vmatpush1.msra.mxu0 0.0
    %218 = vmatprep.subr.mxu0 0.0
    %219 = vmatpush1.msra.mxu0 0.0
    %220 = vmatprep.subr.mxu0 0.0
    %221 = vmatpush1.msra.mxu0 0.0
    %222 = vmatprep.subr.mxu0 0.0
    %223 = vmatpush1.msra.mxu0 0.0
    %224 = vmatprep.subr.mxu0 0.0
    %225 = vmatpush1.msra.mxu0 0.0
    %226 = vmatprep.subr.mxu0 0.0
    %227 = vmatpush1.msra.mxu0 0.0
    %228 = vmatprep.subr.mxu0 0.0
    %229 = vmatpush1.msra.mxu0 0.0
    %230 = vmatprep.subr.mxu0 0.0
    %231 = vmatpush1.msra.mxu0 0.0
    %232 = vmatprep.subr.mxu0 0.0
    %233 = vmatpush1.msra.mxu0 0.0
    %234 = vmatprep.subr.mxu0 0.0
    %235 = vmatpush1.msra.mxu0 0.0
    %236 = vmatprep.subr.mxu0 0.0
    %237 = vmatpush1.msra.mxu0 0.0
    %238 = vmatprep.subr.mxu0 0.0
    %239 = vmatpush1.msra.mxu0 0.0
    %240 = vmatprep.subr.mxu0 0.0
    %241 = vmatpush1.msra.mxu0 0.0
    %242 = vmatprep.mubr.f32.mxu0 0.0
    %243 = vmatmul.mubr.f32.gmra.mrb[0].mxu0 %v167
    %v244 = vpop.f32.mrb[0].mxu0
    %v245 = vadd.f32 0.0, %v244
    %v246 = vpop.f32.mrb[0].mxu0
    %247 = vmatprep.mubr.f32.mxu0 0.0
    %248 = vmatmul.mubr.f32.gmra.mrb[0].mxu0 %v170
    %v249 = vpop.f32.mrb[0].mxu0
    %v250 = vadd.f32 0.0, %v249
    %v251 = vpop.f32.mrb[0].mxu0
    %252 = vmatprep.mubr.f32.mxu0 0.0
    %253 = vmatmul.mubr.f32.gmra.mrb[0].mxu0 %v173
    %v254 = vpop.f32.mrb[0].mxu0
    %v255 = vadd.f32 0.0, %v254
    %v256 = vpop.f32.mrb[0].mxu0
    %257 = vmatprep.mubr.f32.mxu0 0.0
    %258 = vmatmul.mubr.f32.gmra.mrb[0].mxu0 %v176
    %v259 = vpop.f32.mrb[0].mxu0
    %v260 = vadd.f32 0.0, %v259
    %v261 = vpop.f32.mrb[0].mxu0
    %262 = vdwg.mxu0
    %v263 = vld [vmem:[#allocation10] sm:$0xff]
    %v264 = vld [vmem:[#allocation10 + $0x8] sm:$0xff]
    %v265 = vld [vmem:[#allocation10 + $0x10] sm:$0xff]
    %v266 = vld [vmem:[#allocation10 + $0x18] sm:$0xff]
    %v268 = vsel %vm165, %v157, 0
    %v271 = vsel %vm165, %v158, 0
    %v274 = vsel %vm165, %v159, 0
    %v277 = vsel %vm165, %v160, 0
    %279 = vmatprep.subr.mxu0 0.0
    %280 = vmatpush1.msra.mxu0 %v263
    %281 = vmatprep.subr.mxu0 0.0
    %282 = vmatpush1.msra.mxu0 %v264
    %283 = vmatprep.subr.mxu0 0.0
    %284 = vmatpush1.msra.mxu0 %v265
    %285 = vmatprep.subr.mxu0 0.0
    %286 = vmatpush1.msra.mxu0 %v266
    %287 = vmatprep.subr.mxu0 0.0
    %288 = vmatpush1.msra.mxu0 0.0
    %289 = vmatprep.subr.mxu0 0.0
    %290 = vmatpush1.msra.mxu0 0.0
    %291 = vmatprep.subr.mxu0 0.0
    %292 = vmatpush1.msra.mxu0 0.0
    %293 = vmatprep.subr.mxu0 0.0
    %294 = vmatpush1.msra.mxu0 0.0
    %295 = vmatprep.subr.mxu0 0.0
    %296 = vmatpush1.msra.mxu0 0.0
    %297 = vmatprep.subr.mxu0 0.0
    %298 = vmatpush1.msra.mxu0 0.0
    %299 = vmatprep.subr.mxu0 0.0
    %300 = vmatpush1.msra.mxu0 0.0
    %301 = vmatprep.subr.mxu0 0.0
    %302 = vmatpush1.msra.mxu0 0.0
    %303 = vmatprep.subr.mxu0 0.0
    %304 = vmatpush1.msra.mxu0 0.0
    %305 = vmatprep.subr.mxu0 0.0
    %306 = vmatpush1.msra.mxu0 0.0
    %307 = vmatprep.subr.mxu0 0.0
    %308 = vmatpush1.msra.mxu0 0.0
    %309 = vmatprep.subr.mxu0 0.0
    %310 = vmatpush1.msra.mxu0 0.0
    %311 = vmatprep.subr.mxu0 0.0
    %312 = vmatpush1.msra.mxu0 0.0
    %313 = vmatprep.subr.mxu0 0.0
    %314 = vmatpush1.msra.mxu0 0.0
    %315 = vmatprep.subr.mxu0 0.0
    %316 = vmatpush1.msra.mxu0 0.0
    %317 = vmatprep.subr.mxu0 0.0
    %318 = vmatpush1.msra.mxu0 0.0
    %319 = vmatprep.subr.mxu0 0.0
    %320 = vmatpush1.msra.mxu0 0.0
    %321 = vmatprep.subr.mxu0 0.0
    %322 = vmatpush1.msra.mxu0 0.0
    %323 = vmatprep.subr.mxu0 0.0
    %324 = vmatpush1.msra.mxu0 0.0
    %325 = vmatprep.subr.mxu0 0.0
    %326 = vmatpush1.msra.mxu0 0.0
    %327 = vmatprep.subr.mxu0 0.0
    %328 = vmatpush1.msra.mxu0 0.0
    %329 = vmatprep.subr.mxu0 0.0
    %330 = vmatpush1.msra.mxu0 0.0
    %331 = vmatprep.subr.mxu0 0.0
    %332 = vmatpush1.msra.mxu0 0.0
    %333 = vmatprep.subr.mxu0 0.0
    %334 = vmatpush1.msra.mxu0 0.0
    %335 = vmatprep.subr.mxu0 0.0
    %336 = vmatpush1.msra.mxu0 0.0
    %337 = vmatprep.subr.mxu0 0.0
    %338 = vmatpush1.msra.mxu0 0.0
    %339 = vmatprep.subr.mxu0 0.0
    %340 = vmatpush1.msra.mxu0 0.0
    %341 = vmatprep.subr.mxu0 0.0
    %342 = vmatpush1.msra.mxu0 0.0
    %343 = vmatprep.mubr.f32.mxu0 0.0
    %344 = vmatmul.mubr.f32.gmra.mrb[0].mxu0 %v268
    %v345 = vpop.f32.mrb[0].mxu0
    %v346 = vadd.f32 0.0, %v345
    %v347 = vpop.f32.mrb[0].mxu0
    %348 = vmatprep.mubr.f32.mxu0 0.0
    %349 = vmatmul.mubr.f32.gmra.mrb[0].mxu0 %v271
    %v350 = vpop.f32.mrb[0].mxu0
    %v351 = vadd.f32 0.0, %v350
    %v352 = vpop.f32.mrb[0].mxu0
    %353 = vmatprep.mubr.f32.mxu0 0.0
    %354 = vmatmul.mubr.f32.gmra.mrb[0].mxu0 %v274
    %v355 = vpop.f32.mrb[0].mxu0
    %v356 = vadd.f32 0.0, %v355
    %v357 = vpop.f32.mrb[0].mxu0
    %358 = vmatprep.mubr.f32.mxu0 0.0
    %359 = vmatmul.mubr.f32.gmra.mrb[0].mxu0 %v277
    %v360 = vpop.f32.mrb[0].mxu0
    %v361 = vadd.f32 0.0, %v360
    %v362 = vpop.f32.mrb[0].mxu0
    %363 = vdwg.mxu0
    %vm364 = vcmp.gt.f32.partialorder %v245, 0.0
    %vm365 = vcmp.gt.f32.partialorder %v250, 0.0
    %vm366 = vcmp.gt.f32.partialorder %v255, 0.0
    %vm367 = vcmp.gt.f32.partialorder %v260, 0.0
    %v368 = vadd.f32 %v245, 1.0
    %v369 = vadd.f32 %v250, 1.0
    %v370 = vadd.f32 %v255, 1.0
    %v371 = vadd.f32 %v260, 1.0
    %v372 = vmin.f32 %v245, 0.0
    %v373 = vmin.f32 %v250, 0.0
    %v374 = vmin.f32 %v255, 0.0
    %v375 = vmin.f32 %v260, 0.0
    %v376 = vmul.f32 %v372, 1.442695
    %v377 = vpow.pop %v376
    %v378 = vmul.f32 %v373, 1.442695
    %v379 = vpow.pop %v378
    %v380 = vmul.f32 %v374, 1.442695
    %v381 = vpow.pop %v380
    %v382 = vmul.f32 %v375, 1.442695
    %v383 = vpow.pop %v382
    %v384 = vsel %vm364, %v368, %v377
    %v385 = vsel %vm365, %v369, %v379
    %v386 = vsel %vm366, %v370, %v381
    %v387 = vsel %vm367, %v371, %v383
    %vm388 = vcmp.gt.f32.partialorder %v346, 0.0
    %vm389 = vcmp.gt.f32.partialorder %v351, 0.0
    %vm390 = vcmp.gt.f32.partialorder %v356, 0.0
    %vm391 = vcmp.gt.f32.partialorder %v361, 0.0
    %v392 = vadd.f32 %v346, 1.0
    %v393 = vadd.f32 %v351, 1.0
    %v394 = vadd.f32 %v356, 1.0
    %v395 = vadd.f32 %v361, 1.0
    %v396 = vmin.f32 %v346, 0.0
    %v397 = vmin.f32 %v351, 0.0
    %v398 = vmin.f32 %v356, 0.0
    %v399 = vmin.f32 %v361, 0.0
    %v400 = vmul.f32 %v396, 1.442695
    %v401 = vpow.pop %v400
    %v402 = vmul.f32 %v397, 1.442695
    %v403 = vpow.pop %v402
    %v404 = vmul.f32 %v398, 1.442695
    %v405 = vpow.pop %v404
    %v406 = vmul.f32 %v399, 1.442695
    %v407 = vpow.pop %v406
    %v408 = vsel %vm388, %v392, %v401
    %v409 = vsel %vm389, %v393, %v403
    %v410 = vsel %vm390, %v394, %v405
    %v411 = vsel %vm391, %v395, %v407
    %v412 = vld [vmem:[#allocation7] sm:$0xff]
    %v413 = vld [vmem:[#allocation7 + $0x8] sm:$0xff]
    %v414 = vld [vmem:[#allocation7 + $0x10] sm:$0xff]
    %v415 = vld [vmem:[#allocation7 + $0x18] sm:$0xff]
    %416 = vxpose.xlu0.b32.start [1/16] %v408, 128
    %417 = vxpose.xlu0.b32.cont [2/16] %v409, 128
    %418 = vxpose.xlu0.b32.cont [3/16] 0.0, 128
    %419 = vxpose.xlu0.b32.cont [4/16] 0.0, 128
    %420 = vxpose.xlu0.b32.cont [5/16] 0.0, 128
    %421 = vxpose.xlu0.b32.cont [6/16] 0.0, 128
    %422 = vxpose.xlu0.b32.cont [7/16] 0.0, 128
    %423 = vxpose.xlu0.b32.cont [8/16] 0.0, 128
    %424 = vxpose.xlu0.b32.cont [9/16] 0.0, 128
    %425 = vxpose.xlu0.b32.cont [10/16] 0.0, 128
    %426 = vxpose.xlu0.b32.cont [11/16] 0.0, 128
    %427 = vxpose.xlu0.b32.cont [12/16] 0.0, 128
    %428 = vxpose.xlu0.b32.cont [13/16] 0.0, 128
    %429 = vxpose.xlu0.b32.cont [14/16] 0.0, 128
    %430 = vxpose.xlu0.b32.cont [15/16] 0.0, 128
    %431 = vxpose.xlu0.b32.end [16/16] 0.0, 128
    %v432 = vpop.trf.xlu0
    %v433 = vpop.trf.xlu0
    %v434 = vpop.trf.xlu0
    %v435 = vpop.trf.xlu0
    %v436 = vpop.trf.xlu0
    %v437 = vpop.trf.xlu0
    %v438 = vpop.trf.xlu0
    %v439 = vpop.trf.xlu0
    %v440 = vpop.trf.xlu0
    %v441 = vpop.trf.xlu0
    %v442 = vpop.trf.xlu0
    %v443 = vpop.trf.xlu0
    %v444 = vpop.trf.xlu0
    %v445 = vpop.trf.xlu0
    %v446 = vpop.trf.xlu0
    %v447 = vpop.trf.xlu0
    %450 = vrot.lane.b32.xlu0 %v346, 96
    %v451 = vpop.permute.xlu0 %450
    %452 = vrot.lane.b32.xlu0 %v351, 96
    %v453 = vpop.permute.xlu0 %452
    %vm456 = vcmask 130048
    %v458 = vsel %vm456, %v432, 0
    %v461 = vsel %vm456, %v433, 0
    %v464 = vsel %vm456, %v434, 0
    %v467 = vsel %vm456, %v435, 0
    %469 = vmatprep.subr.mxu0 0.0
    %470 = vmatpush1.msra.mxu0 %v451
    %471 = vmatprep.subr.mxu0 0.0
    %472 = vmatpush1.msra.mxu0 %v453
    %473 = vmatprep.subr.mxu0 0.0
    %474 = vmatpush1.msra.mxu0 0.0
    %475 = vmatprep.subr.mxu0 0.0
    %476 = vmatpush1.msra.mxu0 0.0
    %477 = vmatprep.subr.mxu0 0.0
    %478 = vmatpush1.msra.mxu0 0.0
    %479 = vmatprep.subr.mxu0 0.0
    %480 = vmatpush1.msra.mxu0 0.0
    %481 = vmatprep.subr.mxu0 0.0
    %482 = vmatpush1.msra.mxu0 0.0
    %483 = vmatprep.subr.mxu0 0.0
    %484 = vmatpush1.msra.mxu0 0.0
    %485 = vmatprep.subr.mxu0 0.0
    %486 = vmatpush1.msra.mxu0 0.0
    %487 = vmatprep.subr.mxu0 0.0
    %488 = vmatpush1.msra.mxu0 0.0
    %489 = vmatprep.subr.mxu0 0.0
    %490 = vmatpush1.msra.mxu0 0.0
    %491 = vmatprep.subr.mxu0 0.0
    %492 = vmatpush1.msra.mxu0 0.0
    %493 = vmatprep.subr.mxu0 0.0
    %494 = vmatpush1.msra.mxu0 0.0
    %495 = vmatprep.subr.mxu0 0.0
    %496 = vmatpush1.msra.mxu0 0.0
    %497 = vmatprep.subr.mxu0 0.0
    %498 = vmatpush1.msra.mxu0 0.0
    %499 = vmatprep.subr.mxu0 0.0
    %500 = vmatpush1.msra.mxu0 0.0
    %501 = vmatprep.subr.mxu0 0.0
    %502 = vmatpush1.msra.mxu0 0.0
    %503 = vmatprep.subr.mxu0 0.0
    %504 = vmatpush1.msra.mxu0 0.0
    %505 = vmatprep.subr.mxu0 0.0
    %506 = vmatpush1.msra.mxu0 0.0
    %507 = vmatprep.subr.mxu0 0.0
    %508 = vmatpush1.msra.mxu0 0.0
    %509 = vmatprep.subr.mxu0 0.0
    %510 = vmatpush1.msra.mxu0 0.0
    %511 = vmatprep.subr.mxu0 0.0
    %512 = vmatpush1.msra.mxu0 0.0
    %513 = vmatprep.subr.mxu0 0.0
    %514 = vmatpush1.msra.mxu0 0.0
    %515 = vmatprep.subr.mxu0 0.0
    %516 = vmatpush1.msra.mxu0 0.0
    %517 = vmatprep.subr.mxu0 0.0
    %518 = vmatpush1.msra.mxu0 0.0
    %519 = vmatprep.subr.mxu0 0.0
    %520 = vmatpush1.msra.mxu0 0.0
    %521 = vmatprep.subr.mxu0 0.0
    %522 = vmatpush1.msra.mxu0 0.0
    %523 = vmatprep.subr.mxu0 0.0
    %524 = vmatpush1.msra.mxu0 0.0
    %525 = vmatprep.subr.mxu0 0.0
    %526 = vmatpush1.msra.mxu0 0.0
    %527 = vmatprep.subr.mxu0 0.0
    %528 = vmatpush1.msra.mxu0 0.0
    %529 = vmatprep.subr.mxu0 0.0
    %530 = vmatpush1.msra.mxu0 0.0
    %531 = vmatprep.subr.mxu0 0.0
    %532 = vmatpush1.msra.mxu0 0.0
    %533 = vmatprep.mubr.f32.mxu0 0.0
    %534 = vmatmul.mubr.f32.gmra.mrb[0].mxu0 %v458
    %v535 = vpop.f32.mrb[0].mxu0
    %v536 = vadd.f32 0.0, %v535
    %v537 = vpop.f32.mrb[0].mxu0
    %538 = vmatprep.mubr.f32.mxu0 0.0
    %539 = vmatmul.mubr.f32.gmra.mrb[0].mxu0 %v461
    %v540 = vpop.f32.mrb[0].mxu0
    %v541 = vadd.f32 0.0, %v540
    %v542 = vpop.f32.mrb[0].mxu0
    %543 = vmatprep.mubr.f32.mxu0 0.0
    %544 = vmatmul.mubr.f32.gmra.mrb[0].mxu0 %v464
    %v545 = vpop.f32.mrb[0].mxu0
    %v546 = vadd.f32 0.0, %v545
    %v547 = vpop.f32.mrb[0].mxu0
    %548 = vmatprep.mubr.f32.mxu0 0.0
    %549 = vmatmul.mubr.f32.gmra.mrb[0].mxu0 %v467
    %v550 = vpop.f32.mrb[0].mxu0
    %v551 = vadd.f32 0.0, %v550
    %v552 = vpop.f32.mrb[0].mxu0
    %553 = vdwg.mxu0
    %554 = vxpose.xlu0.b32.start [1/16] %v410, 128
    %555 = vxpose.xlu0.b32.cont [2/16] %v411, 128
    %556 = vxpose.xlu0.b32.cont [3/16] 0.0, 128
    %557 = vxpose.xlu0.b32.cont [4/16] 0.0, 128
    %558 = vxpose.xlu0.b32.cont [5/16] 0.0, 128
    %559 = vxpose.xlu0.b32.cont [6/16] 0.0, 128
    %560 = vxpose.xlu0.b32.cont [7/16] 0.0, 128
    %561 = vxpose.xlu0.b32.cont [8/16] 0.0, 128
    %562 = vxpose.xlu0.b32.cont [9/16] 0.0, 128
    %563 = vxpose.xlu0.b32.cont [10/16] 0.0, 128
    %564 = vxpose.xlu0.b32.cont [11/16] 0.0, 128
    %565 = vxpose.xlu0.b32.cont [12/16] 0.0, 128
    %566 = vxpose.xlu0.b32.cont [13/16] 0.0, 128
    %567 = vxpose.xlu0.b32.cont [14/16] 0.0, 128
    %568 = vxpose.xlu0.b32.cont [15/16] 0.0, 128
    %569 = vxpose.xlu0.b32.end [16/16] 0.0, 128
    %v570 = vpop.trf.xlu0
    %v571 = vpop.trf.xlu0
    %v572 = vpop.trf.xlu0
    %v573 = vpop.trf.xlu0
    %v574 = vpop.trf.xlu0
    %v575 = vpop.trf.xlu0
    %v576 = vpop.trf.xlu0
    %v577 = vpop.trf.xlu0
    %v578 = vpop.trf.xlu0
    %v579 = vpop.trf.xlu0
    %v580 = vpop.trf.xlu0
    %v581 = vpop.trf.xlu0
    %v582 = vpop.trf.xlu0
    %v583 = vpop.trf.xlu0
    %v584 = vpop.trf.xlu0
    %v585 = vpop.trf.xlu0
    %588 = vrot.lane.b32.xlu0 %v356, 96
    %v589 = vpop.permute.xlu0 %588
    %590 = vrot.lane.b32.xlu0 %v361, 96
    %v591 = vpop.permute.xlu0 %590
    %v595 = vsel %vm456, %v570, 0
    %v598 = vsel %vm456, %v571, 0
    %v601 = vsel %vm456, %v572, 0
    %v604 = vsel %vm456, %v573, 0
    %606 = vmatprep.subr.mxu0 0.0
    %607 = vmatpush1.msra.mxu0 %v589
    %608 = vmatprep.subr.mxu0 0.0
    %609 = vmatpush1.msra.mxu0 %v591
    %610 = vmatprep.subr.mxu0 0.0
    %611 = vmatpush1.msra.mxu0 0.0
    %612 = vmatprep.subr.mxu0 0.0
    %613 = vmatpush1.msra.mxu0 0.0
    %614 = vmatprep.subr.mxu0 0.0
    %615 = vmatpush1.msra.mxu0 0.0
    %616 = vmatprep.subr.mxu0 0.0
    %617 = vmatpush1.msra.mxu0 0.0
    %618 = vmatprep.subr.mxu0 0.0
    %619 = vmatpush1.msra.mxu0 0.0
    %620 = vmatprep.subr.mxu0 0.0
    %621 = vmatpush1.msra.mxu0 0.0
    %622 = vmatprep.subr.mxu0 0.0
    %623 = vmatpush1.msra.mxu0 0.0
    %624 = vmatprep.subr.mxu0 0.0
    %625 = vmatpush1.msra.mxu0 0.0
    %626 = vmatprep.subr.mxu0 0.0
    %627 = vmatpush1.msra.mxu0 0.0
    %628 = vmatprep.subr.mxu0 0.0
    %629 = vmatpush1.msra.mxu0 0.0
    %630 = vmatprep.subr.mxu0 0.0
    %631 = vmatpush1.msra.mxu0 0.0
    %632 = vmatprep.subr.mxu0 0.0
    %633 = vmatpush1.msra.mxu0 0.0
    %634 = vmatprep.subr.mxu0 0.0
    %635 = vmatpush1.msra.mxu0 0.0
    %636 = vmatprep.subr.mxu0 0.0
    %637 = vmatpush1.msra.mxu0 0.0
    %638 = vmatprep.subr.mxu0 0.0
    %639 = vmatpush1.msra.mxu0 0.0
    %640 = vmatprep.subr.mxu0 0.0
    %641 = vmatpush1.msra.mxu0 0.0
    %642 = vmatprep.subr.mxu0 0.0
    %643 = vmatpush1.msra.mxu0 0.0
    %644 = vmatprep.subr.mxu0 0.0
    %645 = vmatpush1.msra.mxu0 0.0
    %646 = vmatprep.subr.mxu0 0.0
    %647 = vmatpush1.msra.mxu0 0.0
    %648 = vmatprep.subr.mxu0 0.0
    %649 = vmatpush1.msra.mxu0 0.0
    %650 = vmatprep.subr.mxu0 0.0
    %651 = vmatpush1.msra.mxu0 0.0
    %652 = vmatprep.subr.mxu0 0.0
    %653 = vmatpush1.msra.mxu0 0.0
    %654 = vmatprep.subr.mxu0 0.0
    %655 = vmatpush1.msra.mxu0 0.0
    %656 = vmatprep.subr.mxu0 0.0
    %657 = vmatpush1.msra.mxu0 0.0
    %658 = vmatprep.subr.mxu0 0.0
    %659 = vmatpush1.msra.mxu0 0.0
    %660 = vmatprep.subr.mxu0 0.0
    %661 = vmatpush1.msra.mxu0 0.0
    %662 = vmatprep.subr.mxu0 0.0
    %663 = vmatpush1.msra.mxu0 0.0
    %664 = vmatprep.subr.mxu0 0.0
    %665 = vmatpush1.msra.mxu0 0.0
    %666 = vmatprep.subr.mxu0 0.0
    %667 = vmatpush1.msra.mxu0 0.0
    %668 = vmatprep.subr.mxu0 0.0
    %669 = vmatpush1.msra.mxu0 0.0
    %670 = vmatprep.mubr.f32.mxu0 0.0
    %671 = vmatmul.mubr.f32.gmra.mrb[0].mxu0 %v595
    %v672 = vpop.f32.mrb[0].mxu0
    %v673 = vadd.f32 0.0, %v672
    %v674 = vpop.f32.mrb[0].mxu0
    %675 = vmatprep.mubr.f32.mxu0 0.0
    %676 = vmatmul.mubr.f32.gmra.mrb[0].mxu0 %v598
    %v677 = vpop.f32.mrb[0].mxu0
    %v678 = vadd.f32 0.0, %v677
    %v679 = vpop.f32.mrb[0].mxu0
    %680 = vmatprep.mubr.f32.mxu0 0.0
    %681 = vmatmul.mubr.f32.gmra.mrb[0].mxu0 %v601
    %v682 = vpop.f32.mrb[0].mxu0
    %v683 = vadd.f32 0.0, %v682
    %v684 = vpop.f32.mrb[0].mxu0
    %685 = vmatprep.mubr.f32.mxu0 0.0
    %686 = vmatmul.mubr.f32.gmra.mrb[0].mxu0 %v604
    %v687 = vpop.f32.mrb[0].mxu0
    %v688 = vadd.f32 0.0, %v687
    %v689 = vpop.f32.mrb[0].mxu0
    %690 = vdwg.mxu0
    %v691 = vmul.f32 %v536, %v412
    %v692 = vmul.f32 %v541, %v413
    %v693 = vmul.f32 %v546, %v414
    %v694 = vmul.f32 %v551, %v415
    %v695 = vmul.f32 %v673, %v412
    %v696 = vmul.f32 %v678, %v413
    %v697 = vmul.f32 %v683, %v414
    %v698 = vmul.f32 %v688, %v415
    %v700 = vsel %vm165, %v384, 0
    %v703 = vsel %vm165, %v385, 0
    %705 = vmatprep.subr.mxu0 0.0
    %706 = vmatpush1.msra.mxu0 %v691
    %707 = vmatprep.subr.mxu0 0.0
    %708 = vmatpush1.msra.mxu0 %v692
    %709 = vmatprep.subr.mxu0 0.0
    %710 = vmatpush1.msra.mxu0 %v693
    %711 = vmatprep.subr.mxu0 0.0
    %712 = vmatpush1.msra.mxu0 %v694
    %713 = vmatprep.subr.mxu0 0.0
    %714 = vmatpush1.msra.mxu0 0.0
    %715 = vmatprep.subr.mxu0 0.0
    %716 = vmatpush1.msra.mxu0 0.0
    %717 = vmatprep.subr.mxu0 0.0
    %718 = vmatpush1.msra.mxu0 0.0
    %719 = vmatprep.subr.mxu0 0.0
    %720 = vmatpush1.msra.mxu0 0.0
    %721 = vmatprep.subr.mxu0 0.0
    %722 = vmatpush1.msra.mxu0 0.0
    %723 = vmatprep.subr.mxu0 0.0
    %724 = vmatpush1.msra.mxu0 0.0
    %725 = vmatprep.subr.mxu0 0.0
    %726 = vmatpush1.msra.mxu0 0.0
    %727 = vmatprep.subr.mxu0 0.0
    %728 = vmatpush1.msra.mxu0 0.0
    %729 = vmatprep.subr.mxu0 0.0
    %730 = vmatpush1.msra.mxu0 0.0
    %731 = vmatprep.subr.mxu0 0.0
    %732 = vmatpush1.msra.mxu0 0.0
    %733 = vmatprep.subr.mxu0 0.0
    %734 = vmatpush1.msra.mxu0 0.0
    %735 = vmatprep.subr.mxu0 0.0
    %736 = vmatpush1.msra.mxu0 0.0
    %737 = vmatprep.subr.mxu0 0.0
    %738 = vmatpush1.msra.mxu0 0.0
    %739 = vmatprep.subr.mxu0 0.0
    %740 = vmatpush1.msra.mxu0 0.0
    %741 = vmatprep.subr.mxu0 0.0
    %742 = vmatpush1.msra.mxu0 0.0
    %743 = vmatprep.subr.mxu0 0.0
    %744 = vmatpush1.msra.mxu0 0.0
    %745 = vmatprep.subr.mxu0 0.0
    %746 = vmatpush1.msra.mxu0 0.0
    %747 = vmatprep.subr.mxu0 0.0
    %748 = vmatpush1.msra.mxu0 0.0
    %749 = vmatprep.subr.mxu0 0.0
    %750 = vmatpush1.msra.mxu0 0.0
    %751 = vmatprep.subr.mxu0 0.0
    %752 = vmatpush1.msra.mxu0 0.0
    %753 = vmatprep.subr.mxu0 0.0
    %754 = vmatpush1.msra.mxu0 0.0
    %755 = vmatprep.subr.mxu0 0.0
    %756 = vmatpush1.msra.mxu0 0.0
    %757 = vmatprep.subr.mxu0 0.0
    %758 = vmatpush1.msra.mxu0 0.0
    %759 = vmatprep.subr.mxu0 0.0
    %760 = vmatpush1.msra.mxu0 0.0
    %761 = vmatprep.subr.mxu0 0.0
    %762 = vmatpush1.msra.mxu0 0.0
    %763 = vmatprep.subr.mxu0 0.0
    %764 = vmatpush1.msra.mxu0 0.0
    %765 = vmatprep.subr.mxu0 0.0
    %766 = vmatpush1.msra.mxu0 0.0
    %767 = vmatprep.subr.mxu0 0.0
    %768 = vmatpush1.msra.mxu0 0.0
    %769 = vmatprep.mubr.f32.mxu0 0.0
    %770 = vmatmul.mubr.f32.gmra.mrb[0].mxu0 %v700
    %v771 = vpop.f32.mrb[0].mxu0
    %v772 = vadd.f32 0.0, %v771
    %v773 = vpop.f32.mrb[0].mxu0
    %774 = vmatprep.mubr.f32.mxu0 0.0
    %775 = vmatmul.mubr.f32.gmra.mrb[0].mxu0 %v703
    %v776 = vpop.f32.mrb[0].mxu0
    %v777 = vadd.f32 0.0, %v776
    %v778 = vpop.f32.mrb[0].mxu0
    %779 = vdwg.mxu0
    %v781 = vsel %vm165, %v386, 0
    %v784 = vsel %vm165, %v387, 0
    %786 = vmatprep.subr.mxu0 0.0
    %787 = vmatpush1.msra.mxu0 %v695
    %788 = vmatprep.subr.mxu0 0.0
    %789 = vmatpush1.msra.mxu0 %v696
    %790 = vmatprep.subr.mxu0 0.0
    %791 = vmatpush1.msra.mxu0 %v697
    %792 = vmatprep.subr.mxu0 0.0
    %793 = vmatpush1.msra.mxu0 %v698
    %794 = vmatprep.subr.mxu0 0.0
    %795 = vmatpush1.msra.mxu0 0.0
    %796 = vmatprep.subr.mxu0 0.0
    %797 = vmatpush1.msra.mxu0 0.0
    %798 = vmatprep.subr.mxu0 0.0
    %799 = vmatpush1.msra.mxu0 0.0
    %800 = vmatprep.subr.mxu0 0.0
    %801 = vmatpush1.msra.mxu0 0.0
    %802 = vmatprep.subr.mxu0 0.0
    %803 = vmatpush1.msra.mxu0 0.0
    %804 = vmatprep.subr.mxu0 0.0
    %805 = vmatpush1.msra.mxu0 0.0
    %806 = vmatprep.subr.mxu0 0.0
    %807 = vmatpush1.msra.mxu0 0.0
    %808 = vmatprep.subr.mxu0 0.0
    %809 = vmatpush1.msra.mxu0 0.0
    %810 = vmatprep.subr.mxu0 0.0
    %811 = vmatpush1.msra.mxu0 0.0
    %812 = vmatprep.subr.mxu0 0.0
    %813 = vmatpush1.msra.mxu0 0.0
    %814 = vmatprep.subr.mxu0 0.0
    %815 = vmatpush1.msra.mxu0 0.0
    %816 = vmatprep.subr.mxu0 0.0
    %817 = vmatpush1.msra.mxu0 0.0
    %818 = vmatprep.subr.mxu0 0.0
    %819 = vmatpush1.msra.mxu0 0.0
    %820 = vmatprep.subr.mxu0 0.0
    %821 = vmatpush1.msra.mxu0 0.0
    %822 = vmatprep.subr.mxu0 0.0
    %823 = vmatpush1.msra.mxu0 0.0
    %824 = vmatprep.subr.mxu0 0.0
    %825 = vmatpush1.msra.mxu0 0.0
    %826 = vmatprep.subr.mxu0 0.0
    %827 = vmatpush1.msra.mxu0 0.0
    %828 = vmatprep.subr.mxu0 0.0
    %829 = vmatpush1.msra.mxu0 0.0
    %830 = vmatprep.subr.mxu0 0.0
    %831 = vmatpush1.msra.mxu0 0.0
    %832 = vmatprep.subr.mxu0 0.0
    %833 = vmatpush1.msra.mxu0 0.0
    %834 = vmatprep.subr.mxu0 0.0
    %835 = vmatpush1.msra.mxu0 0.0
    %836 = vmatprep.subr.mxu0 0.0
    %837 = vmatpush1.msra.mxu0 0.0
    %838 = vmatprep.subr.mxu0 0.0
    %839 = vmatpush1.msra.mxu0 0.0
    %840 = vmatprep.subr.mxu0 0.0
    %841 = vmatpush1.msra.mxu0 0.0
    %842 = vmatprep.subr.mxu0 0.0
    %843 = vmatpush1.msra.mxu0 0.0
    %844 = vmatprep.subr.mxu0 0.0
    %845 = vmatpush1.msra.mxu0 0.0
    %846 = vmatprep.subr.mxu0 0.0
    %847 = vmatpush1.msra.mxu0 0.0
    %848 = vmatprep.subr.mxu0 0.0
    %849 = vmatpush1.msra.mxu0 0.0
    %850 = vmatprep.mubr.f32.mxu0 0.0
    %851 = vmatmul.mubr.f32.gmra.mrb[0].mxu0 %v781
    %v852 = vpop.f32.mrb[0].mxu0
    %v853 = vadd.f32 0.0, %v852
    %v854 = vpop.f32.mrb[0].mxu0
    %855 = vmatprep.mubr.f32.mxu0 0.0
    %856 = vmatmul.mubr.f32.gmra.mrb[0].mxu0 %v784
    %v857 = vpop.f32.mrb[0].mxu0
    %v858 = vadd.f32 0.0, %v857
    %v859 = vpop.f32.mrb[0].mxu0
    %860 = vdwg.mxu0
    %v861 = vsel %vm165, %v408, 0.0
    %v862 = vsel %vm165, %v409, 0.0
    %v863 = vadd.f32 %v861, %v862
    %v864 = vrot.slane %v863, 4
    %v865 = vadd.f32 %v863, %v864
    %v866 = vrot.slane %v865, 2
    %v867 = vadd.f32 %v865, %v866
    %v868 = vrot.slane %v867, 1
    %v869 = vadd.f32 %v867, %v868
    %v870 = vsel %vm165, %v410, 0.0
    %v871 = vsel %vm165, %v411, 0.0
    %v872 = vadd.f32 %v870, %v871
    %v873 = vrot.slane %v872, 4
    %v874 = vadd.f32 %v872, %v873
    %v875 = vrot.slane %v874, 2
    %v876 = vadd.f32 %v874, %v875
    %v877 = vrot.slane %v876, 1
    %v878 = vadd.f32 %v876, %v877
    %v879 = vmul.f32 %v384, %v869
    %v880 = vmul.f32 %v385, %v869
    %v881 = vmul.f32 %v386, %v878
    %v882 = vmul.f32 %v387, %v878
    %v884 = vsel %vm165, %v879, 0
    %v887 = vsel %vm165, %v880, 0
    %v890 = vsel %vm165, %v881, 0
    %v893 = vsel %vm165, %v882, 0
    %895 = vmatprep.subr.mxu0 0.0
    %896 = vmatpush1.msra.mxu0 %v412
    %897 = vmatprep.subr.mxu0 0.0
    %898 = vmatpush1.msra.mxu0 %v413
    %899 = vmatprep.subr.mxu0 0.0
    %900 = vmatpush1.msra.mxu0 %v414
    %901 = vmatprep.subr.mxu0 0.0
    %902 = vmatpush1.msra.mxu0 %v415
    %903 = vmatprep.subr.mxu0 0.0
    %904 = vmatpush1.msra.mxu0 0.0
    %905 = vmatprep.subr.mxu0 0.0
    %906 = vmatpush1.msra.mxu0 0.0
    %907 = vmatprep.subr.mxu0 0.0
    %908 = vmatpush1.msra.mxu0 0.0
    %909 = vmatprep.subr.mxu0 0.0
    %910 = vmatpush1.msra.mxu0 0.0
    %911 = vmatprep.subr.mxu0 0.0
    %912 = vmatpush1.msra.mxu0 0.0
    %913 = vmatprep.subr.mxu0 0.0
    %914 = vmatpush1.msra.mxu0 0.0
    %915 = vmatprep.subr.mxu0 0.0
    %916 = vmatpush1.msra.mxu0 0.0
    %917 = vmatprep.subr.mxu0 0.0
    %918 = vmatpush1.msra.mxu0 0.0
    %919 = vmatprep.subr.mxu0 0.0
    %920 = vmatpush1.msra.mxu0 0.0
    %921 = vmatprep.subr.mxu0 0.0
    %922 = vmatpush1.msra.mxu0 0.0
    %923 = vmatprep.subr.mxu0 0.0
    %924 = vmatpush1.msra.mxu0 0.0
    %925 = vmatprep.subr.mxu0 0.0
    %926 = vmatpush1.msra.mxu0 0.0
    %927 = vmatprep.subr.mxu0 0.0
    %928 = vmatpush1.msra.mxu0 0.0
    %929 = vmatprep.subr.mxu0 0.0
    %930 = vmatpush1.msra.mxu0 0.0
    %931 = vmatprep.subr.mxu0 0.0
    %932 = vmatpush1.msra.mxu0 0.0
    %933 = vmatprep.subr.mxu0 0.0
    %934 = vmatpush1.msra.mxu0 0.0
    %935 = vmatprep.subr.mxu0 0.0
    %936 = vmatpush1.msra.mxu0 0.0
    %937 = vmatprep.subr.mxu0 0.0
    %938 = vmatpush1.msra.mxu0 0.0
    %939 = vmatprep.subr.mxu0 0.0
    %940 = vmatpush1.msra.mxu0 0.0
    %941 = vmatprep.subr.mxu0 0.0
    %942 = vmatpush1.msra.mxu0 0.0
    %943 = vmatprep.subr.mxu0 0.0
    %944 = vmatpush1.msra.mxu0 0.0
    %945 = vmatprep.subr.mxu0 0.0
    %946 = vmatpush1.msra.mxu0 0.0
    %947 = vmatprep.subr.mxu0 0.0
    %948 = vmatpush1.msra.mxu0 0.0
    %949 = vmatprep.subr.mxu0 0.0
    %950 = vmatpush1.msra.mxu0 0.0
    %951 = vmatprep.subr.mxu0 0.0
    %952 = vmatpush1.msra.mxu0 0.0
    %953 = vmatprep.subr.mxu0 0.0
    %954 = vmatpush1.msra.mxu0 0.0
    %955 = vmatprep.subr.mxu0 0.0
    %956 = vmatpush1.msra.mxu0 0.0
    %957 = vmatprep.subr.mxu0 0.0
    %958 = vmatpush1.msra.mxu0 0.0
    %959 = vmatprep.mubr.f32.mxu0 0.0
    %960 = vmatmul.mubr.f32.gmra.mrb[0].mxu0 %v884
    %v961 = vpop.f32.mrb[0].mxu0
    %v962 = vadd.f32 1e-06, %v961
    %v963 = vpop.f32.mrb[0].mxu0
    %964 = vmatprep.mubr.f32.mxu0 0.0
    %965 = vmatmul.mubr.f32.gmra.mrb[0].mxu0 %v887
    %v966 = vpop.f32.mrb[0].mxu0
    %v967 = vadd.f32 1e-06, %v966
    %v968 = vpop.f32.mrb[0].mxu0
    %969 = vmatprep.mubr.f32.mxu0 0.0
    %970 = vmatmul.mubr.f32.gmra.mrb[0].mxu0 %v890
    %v971 = vpop.f32.mrb[0].mxu0
    %v972 = vadd.f32 1e-06, %v971
    %v973 = vpop.f32.mrb[0].mxu0
    %974 = vmatprep.mubr.f32.mxu0 0.0
    %975 = vmatmul.mubr.f32.gmra.mrb[0].mxu0 %v893
    %v976 = vpop.f32.mrb[0].mxu0
    %v977 = vadd.f32 1e-06, %v976
    %v978 = vpop.f32.mrb[0].mxu0
    %979 = vdwg.mxu0
    %v980 = vrcp.pop %v962
    %v981 = vrcp.pop %v967
    %v982 = vrcp.pop %v972
    %v983 = vrcp.pop %v977
    %v984 = vmul.f32 %v772, %v980
    %v985 = vmul.f32 %v777, %v981
    %v986 = vmul.f32 %v853, %v982
    %v987 = vmul.f32 %v858, %v983
    %v988 = vld [vmem:[#allocation11] sm:$0xff]
    %v989 = vld [vmem:[#allocation11 + $0x8] sm:$0xff]
    %v990 = vld [vmem:[#allocation11 + $0x10] sm:$0xff]
    %v991 = vld [vmem:[#allocation11 + $0x18] sm:$0xff]
    %v993 = vsel %vm165, %v984, 0
    %v996 = vsel %vm165, %v985, 0
    %v999 = vsel %vm165, %v986, 0
    %v1002 = vsel %vm165, %v987, 0
    %1004 = vmatprep.subr.mxu0 0.0
    %1005 = vmatpush1.msra.mxu0 %v988
    %1006 = vmatprep.subr.mxu0 0.0
    %1007 = vmatpush1.msra.mxu0 %v989
    %1008 = vmatprep.subr.mxu0 0.0
    %1009 = vmatpush1.msra.mxu0 %v990
    %1010 = vmatprep.subr.mxu0 0.0
    %1011 = vmatpush1.msra.mxu0 %v991
    %1012 = vmatprep.subr.mxu0 0.0
    %1013 = vmatpush1.msra.mxu0 0.0
    %1014 = vmatprep.subr.mxu0 0.0
    %1015 = vmatpush1.msra.mxu0 0.0
    %1016 = vmatprep.subr.mxu0 0.0
    %1017 = vmatpush1.msra.mxu0 0.0
    %1018 = vmatprep.subr.mxu0 0.0
    %1019 = vmatpush1.msra.mxu0 0.0
    %1020 = vmatprep.subr.mxu0 0.0
    %1021 = vmatpush1.msra.mxu0 0.0
    %1022 = vmatprep.subr.mxu0 0.0
    %1023 = vmatpush1.msra.mxu0 0.0
    %1024 = vmatprep.subr.mxu0 0.0
    %1025 = vmatpush1.msra.mxu0 0.0
    %1026 = vmatprep.subr.mxu0 0.0
    %1027 = vmatpush1.msra.mxu0 0.0
    %1028 = vmatprep.subr.mxu0 0.0
    %1029 = vmatpush1.msra.mxu0 0.0
    %1030 = vmatprep.subr.mxu0 0.0
    %1031 = vmatpush1.msra.mxu0 0.0
    %1032 = vmatprep.subr.mxu0 0.0
    %1033 = vmatpush1.msra.mxu0 0.0
    %1034 = vmatprep.subr.mxu0 0.0
    %1035 = vmatpush1.msra.mxu0 0.0
    %1036 = vmatprep.subr.mxu0 0.0
    %1037 = vmatpush1.msra.mxu0 0.0
    %1038 = vmatprep.subr.mxu0 0.0
    %1039 = vmatpush1.msra.mxu0 0.0
    %1040 = vmatprep.subr.mxu0 0.0
    %1041 = vmatpush1.msra.mxu0 0.0
    %1042 = vmatprep.subr.mxu0 0.0
    %1043 = vmatpush1.msra.mxu0 0.0
    %1044 = vmatprep.subr.mxu0 0.0
    %1045 = vmatpush1.msra.mxu0 0.0
    %1046 = vmatprep.subr.mxu0 0.0
    %1047 = vmatpush1.msra.mxu0 0.0
    %1048 = vmatprep.subr.mxu0 0.0
    %1049 = vmatpush1.msra.mxu0 0.0
    %1050 = vmatprep.subr.mxu0 0.0
    %1051 = vmatpush1.msra.mxu0 0.0
    %1052 = vmatprep.subr.mxu0 0.0
    %1053 = vmatpush1.msra.mxu0 0.0
    %1054 = vmatprep.subr.mxu0 0.0
    %1055 = vmatpush1.msra.mxu0 0.0
    %1056 = vmatprep.subr.mxu0 0.0
    %1057 = vmatpush1.msra.mxu0 0.0
    %1058 = vmatprep.subr.mxu0 0.0
    %1059 = vmatpush1.msra.mxu0 0.0
    %1060 = vmatprep.subr.mxu0 0.0
    %1061 = vmatpush1.msra.mxu0 0.0
    %1062 = vmatprep.subr.mxu0 0.0
    %1063 = vmatpush1.msra.mxu0 0.0
    %1064 = vmatprep.subr.mxu0 0.0
    %1065 = vmatpush1.msra.mxu0 0.0
    %1066 = vmatprep.subr.mxu0 0.0
    %1067 = vmatpush1.msra.mxu0 0.0
    %1068 = vmatprep.mubr.f32.mxu0 0.0
    %1069 = vmatmul.mubr.f32.gmra.mrb[0].mxu0 %v993
    %v1070 = vpop.f32.mrb[0].mxu0
    %v1071 = vadd.f32 0.0, %v1070
    %v1072 = vpop.f32.mrb[0].mxu0
    %1073 = vmatprep.mubr.f32.mxu0 0.0
    %1074 = vmatmul.mubr.f32.gmra.mrb[0].mxu0 %v996
    %v1075 = vpop.f32.mrb[0].mxu0
    %v1076 = vadd.f32 0.0, %v1075
    %v1077 = vpop.f32.mrb[0].mxu0
    %1078 = vmatprep.mubr.f32.mxu0 0.0
    %1079 = vmatmul.mubr.f32.gmra.mrb[0].mxu0 %v999
    %v1080 = vpop.f32.mrb[0].mxu0
    %v1081 = vadd.f32 0.0, %v1080
    %v1082 = vpop.f32.mrb[0].mxu0
    %1083 = vmatprep.mubr.f32.mxu0 0.0
    %1084 = vmatmul.mubr.f32.gmra.mrb[0].mxu0 %v1002
    %v1085 = vpop.f32.mrb[0].mxu0
    %v1086 = vadd.f32 0.0, %v1085
    %v1087 = vpop.f32.mrb[0].mxu0
    %1088 = vdwg.mxu0
    %v1089 = vld [vmem:[#allocation16] sm:$0x1]
    %v1090 = vld [vmem:[#allocation16 + $0x1] sm:$0x1]
    %v1091 = vsel %vm165, %v1071, 0.0
    %1092 = vadd.xlane.f32.xlu0 %v1091
    %v1093 = vpop.xlane.xlu0 %1092
    %v1094 = vsel %vm165, %v1076, 0.0
    %1095 = vadd.xlane.f32.xlu0 %v1094
    %v1096 = vpop.xlane.xlu0 %1095
    %v1097 = vsel %vm165, %v1081, 0.0
    %1098 = vadd.xlane.f32.xlu0 %v1097
    %v1099 = vpop.xlane.xlu0 %1098
    %v1100 = vsel %vm165, %v1086, 0.0
    %1101 = vadd.xlane.f32.xlu0 %v1100
    %v1102 = vpop.xlane.xlu0 %1101
    %v1103 = vrcp.pop 32.0
    %v1104 = vmul.f32 %v1093, %v1103
    %v1105 = vmul.f32 %v1096, %v1103
    %v1106 = vmul.f32 %v1099, %v1103
    %v1107 = vmul.f32 %v1102, %v1103
    %v1108 = vsub.f32 %v1071, %v1104
    %v1109 = vsub.f32 %v1076, %v1105
    %v1110 = vsub.f32 %v1081, %v1106
    %v1111 = vsub.f32 %v1086, %v1107
    %v1112 = vmul.f32 %v1108, %v1108
    %v1113 = vmul.f32 %v1109, %v1109
    %v1114 = vmul.f32 %v1110, %v1110
    %v1115 = vmul.f32 %v1111, %v1111
    %v1116 = vsel %vm165, %v1112, 0.0
    %1117 = vadd.xlane.f32.xlu0 %v1116
    %v1118 = vpop.xlane.xlu0 %1117
    %v1119 = vsel %vm165, %v1113, 0.0
    %1120 = vadd.xlane.f32.xlu0 %v1119
    %v1121 = vpop.xlane.xlu0 %1120
    %v1122 = vsel %vm165, %v1114, 0.0
    %1123 = vadd.xlane.f32.xlu0 %v1122
    %v1124 = vpop.xlane.xlu0 %1123
    %v1125 = vsel %vm165, %v1115, 0.0
    %1126 = vadd.xlane.f32.xlu0 %v1125
    %v1127 = vpop.xlane.xlu0 %1126
    %v1128 = vmul.f32 %v1118, %v1103
    %v1129 = vmul.f32 %v1121, %v1103
    %v1130 = vmul.f32 %v1124, %v1103
    %v1131 = vmul.f32 %v1127, %v1103
    %v1132 = vadd.f32 %v1128, 1e-05
    %v1133 = vadd.f32 %v1129, 1e-05
    %v1134 = vadd.f32 %v1130, 1e-05
    %v1135 = vadd.f32 %v1131, 1e-05
    %v1136 = vrsqrt.pop %v1132
    %v1137 = vrsqrt.pop %v1133
    %v1138 = vrsqrt.pop %v1134
    %v1139 = vrsqrt.pop %v1135
    %v1140 = vmul.f32 %v1108, %v1136
    %v1141 = vmul.f32 %v1109, %v1137
    %v1142 = vmul.f32 %v1110, %v1138
    %v1143 = vmul.f32 %v1111, %v1139
    %v1144 = vlaneseq
    %v1145 = vshrl.u32 %v1144, 7
    %v1146 = vsub.s32 0, %v1145
    %v1147 = vrot.slane %v1089, %v1146
    %v1148 = vmul.f32 %v1140, %v1147
    %v1149 = vmul.f32 %v1141, %v1147
    %v1150 = vmul.f32 %v1142, %v1147
    %v1151 = vmul.f32 %v1143, %v1147
    %v1152 = vlaneseq
    %v1153 = vshrl.u32 %v1152, 7
    %v1154 = vsub.s32 0, %v1153
    %v1155 = vrot.slane %v1090, %v1154
    %v1156 = vadd.f32 %v1148, %v1155
    %v1157 = vadd.f32 %v1149, %v1155
    %v1158 = vadd.f32 %v1150, %v1155
    %v1159 = vadd.f32 %v1151, %v1155
    %v1160 = vld [vmem:[#allocation13] sm:$0xff]
    %v1161 = vld [vmem:[#allocation13 + $0x8] sm:$0xff]
    %v1162 = vld [vmem:[#allocation13 + $0x10] sm:$0xff]
    %v1163 = vld [vmem:[#allocation13 + $0x18] sm:$0xff]
    %v1165 = vsel %vm165, %v1156, 0
    %v1168 = vsel %vm165, %v1157, 0
    %v1171 = vsel %vm165, %v1158, 0
    %v1174 = vsel %vm165, %v1159, 0
    %1176 = vmatprep.subr.mxu0 0.0
    %1177 = vmatpush1.msra.mxu0 %v1160
    %1178 = vmatprep.subr.mxu0 0.0
    %1179 = vmatpush1.msra.mxu0 %v1161
    %1180 = vmatprep.subr.mxu0 0.0
    %1181 = vmatpush1.msra.mxu0 %v1162
    %1182 = vmatprep.subr.mxu0 0.0
    %1183 = vmatpush1.msra.mxu0 %v1163
    %1184 = vmatprep.subr.mxu0 0.0
    %1185 = vmatpush1.msra.mxu0 0.0
    %1186 = vmatprep.subr.mxu0 0.0
    %1187 = vmatpush1.msra.mxu0 0.0
    %1188 = vmatprep.subr.mxu0 0.0
    %1189 = vmatpush1.msra.mxu0 0.0
    %1190 = vmatprep.subr.mxu0 0.0
    %1191 = vmatpush1.msra.mxu0 0.0
    %1192 = vmatprep.subr.mxu0 0.0
    %1193 = vmatpush1.msra.mxu0 0.0
    %1194 = vmatprep.subr.mxu0 0.0
    %1195 = vmatpush1.msra.mxu0 0.0
    %1196 = vmatprep.subr.mxu0 0.0
    %1197 = vmatpush1.msra.mxu0 0.0
    %1198 = vmatprep.subr.mxu0 0.0
    %1199 = vmatpush1.msra.mxu0 0.0
    %1200 = vmatprep.subr.mxu0 0.0
    %1201 = vmatpush1.msra.mxu0 0.0
    %1202 = vmatprep.subr.mxu0 0.0
    %1203 = vmatpush1.msra.mxu0 0.0
    %1204 = vmatprep.subr.mxu0 0.0
    %1205 = vmatpush1.msra.mxu0 0.0
    %1206 = vmatprep.subr.mxu0 0.0
    %1207 = vmatpush1.msra.mxu0 0.0
    %1208 = vmatprep.subr.mxu0 0.0
    %1209 = vmatpush1.msra.mxu0 0.0
    %1210 = vmatprep.subr.mxu0 0.0
    %1211 = vmatpush1.msra.mxu0 0.0
    %1212 = vmatprep.subr.mxu0 0.0
    %1213 = vmatpush1.msra.mxu0 0.0
    %1214 = vmatprep.subr.mxu0 0.0
    %1215 = vmatpush1.msra.mxu0 0.0
    %1216 = vmatprep.subr.mxu0 0.0
    %1217 = vmatpush1.msra.mxu0 0.0
    %1218 = vmatprep.subr.mxu0 0.0
    %1219 = vmatpush1.msra.mxu0 0.0
    %1220 = vmatprep.subr.mxu0 0.0
    %1221 = vmatpush1.msra.mxu0 0.0
    %1222 = vmatprep.subr.mxu0 0.0
    %1223 = vmatpush1.msra.mxu0 0.0
    %1224 = vmatprep.subr.mxu0 0.0
    %1225 = vmatpush1.msra.mxu0 0.0
    %1226 = vmatprep.subr.mxu0 0.0
    %1227 = vmatpush1.msra.mxu0 0.0
    %1228 = vmatprep.subr.mxu0 0.0
    %1229 = vmatpush1.msra.mxu0 0.0
    %1230 = vmatprep.subr.mxu0 0.0
    %1231 = vmatpush1.msra.mxu0 0.0
    %1232 = vmatprep.subr.mxu0 0.0
    %1233 = vmatpush1.msra.mxu0 0.0
    %1234 = vmatprep.subr.mxu0 0.0
    %1235 = vmatpush1.msra.mxu0 0.0
    %1236 = vmatprep.subr.mxu0 0.0
    %1237 = vmatpush1.msra.mxu0 0.0
    %1238 = vmatprep.subr.mxu0 0.0
    %1239 = vmatpush1.msra.mxu0 0.0
    %1240 = vmatprep.mubr.f32.mxu0 0.0
    %1241 = vmatmul.mubr.f32.gmra.mrb[0].mxu0 %v1165
    %v1242 = vpop.f32.mrb[0].mxu0
    %v1243 = vadd.f32 0.0, %v1242
    %v1244 = vpop.f32.mrb[0].mxu0
    %1245 = vmatprep.mubr.f32.mxu0 0.0
    %1246 = vmatmul.mubr.f32.gmra.mrb[0].mxu0 %v1168
    %v1247 = vpop.f32.mrb[0].mxu0
    %v1248 = vadd.f32 0.0, %v1247
    %v1249 = vpop.f32.mrb[0].mxu0
    %1250 = vmatprep.mubr.f32.mxu0 0.0
    %1251 = vmatmul.mubr.f32.gmra.mrb[0].mxu0 %v1171
    %v1252 = vpop.f32.mrb[0].mxu0
    %v1253 = vadd.f32 0.0, %v1252
    %v1254 = vpop.f32.mrb[0].mxu0
    %1255 = vmatprep.mubr.f32.mxu0 0.0
    %1256 = vmatmul.mubr.f32.gmra.mrb[0].mxu0 %v1174
    %v1257 = vpop.f32.mrb[0].mxu0
    %v1258 = vadd.f32 0.0, %v1257
    %v1259 = vpop.f32.mrb[0].mxu0
    %1260 = vdwg.mxu0
    %1265 = vrot.lane.b32.xlu0 %v1243, 32
    %v1266 = vpop.permute.xlu0 %1265
    %1267 = vrot.lane.b32.xlu0 %v1248, 32
    %v1268 = vpop.permute.xlu0 %1267
    %1269 = vrot.lane.b32.xlu0 %v1253, 32
    %v1270 = vpop.permute.xlu0 %1269
    %1271 = vrot.lane.b32.xlu0 %v1258, 32
    %v1272 = vpop.permute.xlu0 %1271
    %v1277 = vadd.f32 %v245, %v1266
    %v1278 = vadd.f32 %v250, %v1268
    %v1279 = vadd.f32 %v255, %v1270
    %v1280 = vadd.f32 %v260, %v1272
    %v1281 = vmax.f32 %v1277, 0.0
    %v1282 = vmax.f32 %v1278, 0.0
    %v1283 = vmax.f32 %v1279, 0.0
    %v1284 = vmax.f32 %v1280, 0.0
    %v1285 = vld [vmem:[#allocation14] sm:$0xff]
    %v1286 = vld [vmem:[#allocation14 + $0x8] sm:$0xff]
    %v1287 = vld [vmem:[#allocation14 + $0x10] sm:$0xff]
    %v1288 = vld [vmem:[#allocation14 + $0x18] sm:$0xff]
    %v1289 = vld [vmem:[#allocation14 + $0x20] sm:$0xff]
    %v1290 = vld [vmem:[#allocation14 + $0x28] sm:$0xff]
    %v1291 = vld [vmem:[#allocation14 + $0x30] sm:$0xff]
    %v1292 = vld [vmem:[#allocation14 + $0x38] sm:$0xff]
    %1297 = vrot.lane.b32.xlu0 %v1281, 96
    %v1298 = vpop.permute.xlu0 %1297
    %1299 = vrot.lane.b32.xlu0 %v1282, 96
    %v1300 = vpop.permute.xlu0 %1299
    %1301 = vrot.lane.b32.xlu0 %v1283, 96
    %v1302 = vpop.permute.xlu0 %1301
    %1303 = vrot.lane.b32.xlu0 %v1284, 96
    %v1304 = vpop.permute.xlu0 %1303
    %vm1305 = vcmask 523264
    %v1306 = vsel %vm1305, %v1298, 0
    %v1308 = vsel %vm1305, %v1300, 0
    %v1310 = vsel %vm1305, %v1302, 0
    %v1312 = vsel %vm1305, %v1304, 0
    %1314 = vmatprep.subr.mxu0 0.0
    %1315 = vmatpush1.msra.mxu0 %v1285
    %1316 = vmatprep.subr.mxu0 0.0
    %1317 = vmatpush1.msra.mxu0 %v1286
    %1318 = vmatprep.subr.mxu0 0.0
    %1319 = vmatpush1.msra.mxu0 %v1287
    %1320 = vmatprep.subr.mxu0 0.0
    %1321 = vmatpush1.msra.mxu0 %v1288
    %1322 = vmatprep.subr.mxu0 0.0
    %1323 = vmatpush1.msra.mxu0 %v1289
    %1324 = vmatprep.subr.mxu0 0.0
    %1325 = vmatpush1.msra.mxu0 %v1290
    %1326 = vmatprep.subr.mxu0 0.0
    %1327 = vmatpush1.msra.mxu0 %v1291
    %1328 = vmatprep.subr.mxu0 0.0
    %1329 = vmatpush1.msra.mxu0 %v1292
    %1330 = vmatprep.subr.mxu0 0.0
    %1331 = vmatpush1.msra.mxu0 0.0
    %1332 = vmatprep.subr.mxu0 0.0
    %1333 = vmatpush1.msra.mxu0 0.0
    %1334 = vmatprep.subr.mxu0 0.0
    %1335 = vmatpush1.msra.mxu0 0.0
    %1336 = vmatprep.subr.mxu0 0.0
    %1337 = vmatpush1.msra.mxu0 0.0
    %1338 = vmatprep.subr.mxu0 0.0
    %1339 = vmatpush1.msra.mxu0 0.0
    %1340 = vmatprep.subr.mxu0 0.0
    %1341 = vmatpush1.msra.mxu0 0.0
    %1342 = vmatprep.subr.mxu0 0.0
    %1343 = vmatpush1.msra.mxu0 0.0
    %1344 = vmatprep.subr.mxu0 0.0
    %1345 = vmatpush1.msra.mxu0 0.0
    %1346 = vmatprep.subr.mxu0 0.0
    %1347 = vmatpush1.msra.mxu0 0.0
    %1348 = vmatprep.subr.mxu0 0.0
    %1349 = vmatpush1.msra.mxu0 0.0
    %1350 = vmatprep.subr.mxu0 0.0
    %1351 = vmatpush1.msra.mxu0 0.0
    %1352 = vmatprep.subr.mxu0 0.0
    %1353 = vmatpush1.msra.mxu0 0.0
    %1354 = vmatprep.subr.mxu0 0.0
    %1355 = vmatpush1.msra.mxu0 0.0
    %1356 = vmatprep.subr.mxu0 0.0
    %1357 = vmatpush1.msra.mxu0 0.0
    %1358 = vmatprep.subr.mxu0 0.0
    %1359 = vmatpush1.msra.mxu0 0.0
    %1360 = vmatprep.subr.mxu0 0.0
    %1361 = vmatpush1.msra.mxu0 0.0
    %1362 = vmatprep.subr.mxu0 0.0
    %1363 = vmatpush1.msra.mxu0 0.0
    %1364 = vmatprep.subr.mxu0 0.0
    %1365 = vmatpush1.msra.mxu0 0.0
    %1366 = vmatprep.subr.mxu0 0.0
    %1367 = vmatpush1.msra.mxu0 0.0
    %1368 = vmatprep.subr.mxu0 0.0
    %1369 = vmatpush1.msra.mxu0 0.0
    %1370 = vmatprep.subr.mxu0 0.0
    %1371 = vmatpush1.msra.mxu0 0.0
    %1372 = vmatprep.subr.mxu0 0.0
    %1373 = vmatpush1.msra.mxu0 0.0
    %1374 = vmatprep.subr.mxu0 0.0
    %1375 = vmatpush1.msra.mxu0 0.0
    %1376 = vmatprep.subr.mxu0 0.0
    %1377 = vmatpush1.msra.mxu0 0.0
    %1378 = vmatprep.mubr.f32.mxu0 0.0
    %1379 = vmatmul.mubr.f32.gmra.mrb[0].mxu0 %v1306
    %v1380 = vpop.f32.mrb[0].mxu0
    %v1381 = vadd.f32 0.0, %v1380
    %v1382 = vpop.f32.mrb[0].mxu0
    %1383 = vmatprep.mubr.f32.mxu0 0.0
    %1384 = vmatmul.mubr.f32.gmra.mrb[0].mxu0 %v1308
    %v1385 = vpop.f32.mrb[0].mxu0
    %v1386 = vadd.f32 0.0, %v1385
    %v1387 = vpop.f32.mrb[0].mxu0
    %1388 = vmatprep.mubr.f32.mxu0 0.0
    %1389 = vmatmul.mubr.f32.gmra.mrb[0].mxu0 %v1310
    %v1390 = vpop.f32.mrb[0].mxu0
    %v1391 = vadd.f32 0.0, %v1390
    %v1392 = vpop.f32.mrb[0].mxu0
    %1393 = vmatprep.mubr.f32.mxu0 0.0
    %1394 = vmatmul.mubr.f32.gmra.mrb[0].mxu0 %v1312
    %v1395 = vpop.f32.mrb[0].mxu0
    %v1396 = vadd.f32 0.0, %v1395
    %v1397 = vpop.f32.mrb[0].mxu0
    %1398 = vdwg.mxu0
    %v1399 = vld [vmem:[#allocation16 + $0x2] sm:$0x1]
    %v1400 = vld [vmem:[#allocation16 + $0x3] sm:$0x1]
    %v1401 = vsel %vm165, %v1381, 0.0
    %1402 = vadd.xlane.f32.xlu0 %v1401
    %v1403 = vpop.xlane.xlu0 %1402
    %v1404 = vsel %vm165, %v1386, 0.0
    %1405 = vadd.xlane.f32.xlu0 %v1404
    %v1406 = vpop.xlane.xlu0 %1405
    %v1407 = vsel %vm165, %v1391, 0.0
    %1408 = vadd.xlane.f32.xlu0 %v1407
    %v1409 = vpop.xlane.xlu0 %1408
    %v1410 = vsel %vm165, %v1396, 0.0
    %1411 = vadd.xlane.f32.xlu0 %v1410
    %v1412 = vpop.xlane.xlu0 %1411
    %v1413 = vmul.f32 %v1403, %v1103
    %v1414 = vmul.f32 %v1406, %v1103
    %v1415 = vmul.f32 %v1409, %v1103
    %v1416 = vmul.f32 %v1412, %v1103
    %v1417 = vsub.f32 %v1381, %v1413
    %v1418 = vsub.f32 %v1386, %v1414
    %v1419 = vsub.f32 %v1391, %v1415
    %v1420 = vsub.f32 %v1396, %v1416
    %v1421 = vmul.f32 %v1417, %v1417
    %v1422 = vmul.f32 %v1418, %v1418
    %v1423 = vmul.f32 %v1419, %v1419
    %v1424 = vmul.f32 %v1420, %v1420
    %v1425 = vsel %vm165, %v1421, 0.0
    %1426 = vadd.xlane.f32.xlu0 %v1425
    %v1427 = vpop.xlane.xlu0 %1426
    %v1428 = vsel %vm165, %v1422, 0.0
    %1429 = vadd.xlane.f32.xlu0 %v1428
    %v1430 = vpop.xlane.xlu0 %1429
    %v1431 = vsel %vm165, %v1423, 0.0
    %1432 = vadd.xlane.f32.xlu0 %v1431
    %v1433 = vpop.xlane.xlu0 %1432
    %v1434 = vsel %vm165, %v1424, 0.0
    %1435 = vadd.xlane.f32.xlu0 %v1434
    %v1436 = vpop.xlane.xlu0 %1435
    %v1437 = vmul.f32 %v1427, %v1103
    %v1438 = vmul.f32 %v1430, %v1103
    %v1439 = vmul.f32 %v1433, %v1103
    %v1440 = vmul.f32 %v1436, %v1103
    %v1441 = vadd.f32 %v1437, 1e-05
    %v1442 = vadd.f32 %v1438, 1e-05
    %v1443 = vadd.f32 %v1439, 1e-05
    %v1444 = vadd.f32 %v1440, 1e-05
    %v1445 = vrsqrt.pop %v1441
    %v1446 = vrsqrt.pop %v1442
    %v1447 = vrsqrt.pop %v1443
    %v1448 = vrsqrt.pop %v1444
    %v1449 = vmul.f32 %v1417, %v1445
    %v1450 = vmul.f32 %v1418, %v1446
    %v1451 = vmul.f32 %v1419, %v1447
    %v1452 = vmul.f32 %v1420, %v1448
    %v1453 = vlaneseq
    %v1454 = vshrl.u32 %v1453, 7
    %v1455 = vsub.s32 0, %v1454
    %v1456 = vrot.slane %v1399, %v1455
    %v1457 = vmul.f32 %v1449, %v1456
    %v1458 = vmul.f32 %v1450, %v1456
    %v1459 = vmul.f32 %v1451, %v1456
    %v1460 = vmul.f32 %v1452, %v1456
    %v1461 = vlaneseq
    %v1462 = vshrl.u32 %v1461, 7
    %v1463 = vsub.s32 0, %v1462
    %v1464 = vrot.slane %v1400, %v1463
    %v1465 = vadd.f32 %v1457, %v1464
    %v1466 = vadd.f32 %v1458, %v1464
    %v1467 = vadd.f32 %v1459, %v1464
    %v1468 = vadd.f32 %v1460, %v1464
    %v1469 = vadd.f32 %v153, %v1465
    %v1470 = vadd.f32 %v154, %v1466
    %v1471 = vadd.f32 %v155, %v1467
    %v1472 = vadd.f32 %v156, %v1468
    %1473 = vst.msk [vmem:[#allocation17] sm:$0xff] %vm165, %v1469
    %1474 = vst.msk [vmem:[#allocation17 + $0x8] sm:$0xff] %vm165, %v1470
    %1475 = vst.msk [vmem:[#allocation17 + $0x10] sm:$0xff] %vm165, %v1471
    %1476 = vst.msk [vmem:[#allocation17 + $0x18] sm:$0xff] %vm165, %v1472
    // Predicated region
    $region74: #{tpu_custom_call.1} parent=1 // pred_check
      _
    $region75: #{tpu_custom_call.1} parent=1 // pred_check_branch
      %1478 = sbr.rel (0) target = $region77
    $region76: #{tpu_custom_call.1} parent=1 // pred_region
      %s1480 = ssub.s32 512, 512
      %1481 = vsyncadd [#allocation4], %s1480
      %s1482 = sshll.u32 [#allocation17], 4
      %s1483 = int_to_ptr.vmem [resolvable:$true] %s1482
      %1488 = dma.vmem_to_hbm [thread:$0]  %s1483, 512, %s9, [#allocation4], 128, 128, 8
    $region77: #{tpu_custom_call.1} parent=1 // pred_fallthru
      _
    // Predicated region
    $region78: #{tpu_custom_call.1} parent=1 // pred_check
      _
    $region79: #{tpu_custom_call.1} parent=1 // pred_check_branch
      %1490 = sbr.rel (0) target = $region81
    $region80: #{tpu_custom_call.1} parent=1 // pred_region
      %1491 = dma.done [#allocation4], 512
    $region81: #{tpu_custom_call.1} parent=1 // pred_fallthru
      _
    %1492 = vsyncpa [#allocation3], 1
    %1493 = vsyncpa [#allocation6], 1
    %1494 = vsyncpa [#allocation9], 1
    %1495 = vsyncpa [#allocation12], 1
    %1496 = vsyncpa [#allocation15], 1
    %1497 = vsyncpa [#allocation4], 1

</llo_original>
